<compile_context>
chip_gen: v7x
topology: tpu7x:2x2x1
jax: 0.10.0
libtpu: 0.0.40
codegen_flags: <defaults>
</compile_context>

<pallas_src>
import jax
import jax.numpy as jnp
from jax.experimental import pallas as pl
from jax.experimental.pallas import tpu as pltpu


# ----------------------------------------------------------------------------
# Pallas kernel
# ----------------------------------------------------------------------------
def _make_gru_kernel(TT, B, H, output_classes):
    """Kernel processing a TT-step, batch-B block of a GRU + Linear + softmax."""
    output_classes = tuple(output_classes)

    def kernel(x_ref, wih_ref, whh_ref, bih_ref, bhh_ref, wout_ref, bout_ref,
               out_ref, h_ref, gi_ref, hs_ref):
        # x_ref:   (TT*B, I)   time-major flattened input block
        # out_ref: (TT*B, O)   merged probabilities for the block
        # h_ref:   (B, H)      carried hidden state (VMEM scratch)
        # gi_ref:  (TT*B, 3H)  hoisted input projection
        # hs_ref:  (TT*B, H)   hidden states of the block
        tb = pl.program_id(0)

        # PyTorch forward() starts from a zero hidden state.
        @pl.when(tb == 0)
        def _():
            h_ref[...] = jnp.zeros_like(h_ref)

        # ---- Hoisted input projection for the whole block (one tall matmul).
        gi_ref[...] = (
            jnp.dot(x_ref[...].astype(jnp.float32), wih_ref[...],
                    preferred_element_type=jnp.float32) + bih_ref[...])

        # ---- Sequential GRU recurrence over the TT steps of this block.
        def step(j, h):
            off = pl.multiple_of(j * B, B)
            gi = gi_ref[pl.ds(off, B), :]                       # (B, 3H)
            gh = (jnp.dot(h, whh_ref[...],
                          preferred_element_type=jnp.float32) + bhh_ref[...])
            r = jax.nn.sigmoid(gi[:, 0 * H:1 * H] + gh[:, 0 * H:1 * H])
            z = jax.nn.sigmoid(gi[:, 1 * H:2 * H] + gh[:, 1 * H:2 * H])
            n = jnp.tanh(gi[:, 2 * H:3 * H] + r * gh[:, 2 * H:3 * H])
            h_new = (1.0 - z) * n + z * h
            hs_ref[pl.ds(off, B), :] = h_new
            return h_new

        unroll = True if TT <= 32 else 8
        h_last = jax.lax.fori_loop(0, TT, step, h_ref[...], unroll=unroll)
        h_ref[...] = h_last                                     # carry to next block

        # ---- Output Linear + per-group softmax, hoisted out of the recurrence.
        logits = (jnp.dot(hs_ref[...], wout_ref[...],
                          preferred_element_type=jnp.float32) + bout_ref[...])
        c = 0
        for n_g in output_classes:
            sl = logits[:, c:c + n_g]
            m = jnp.max(sl, axis=-1, keepdims=True)
            e = jnp.exp(sl - m)
            s = jnp.sum(e, axis=-1, keepdims=True)
            p = e * pl.reciprocal(s, approx=True)               # EUP reciprocal
            out_ref[:, c:c + n_g] = p.astype(out_ref.dtype)
            c += n_g

    return kernel


# ----------------------------------------------------------------------------
# Wrapper: batch-first [B, T, I] in, list of [B, T, n_g] probability tensors out
# ----------------------------------------------------------------------------
def rnn_predictor_forward(x, params, output_classes, time_block=None):
    w_ih, w_hh, b_ih, b_hh, w_out, b_out = params
    B, T, I = x.shape
    H = w_hh.shape[0]
    O = w_out.shape[1]
    output_classes = tuple(output_classes)
    assert sum(output_classes) == O

    # Choose the time block (TT steps per grid iteration).  For TT < T we pick
    # TT=128 so (TT*B) is always a multiple of 8 (sublane constraint).
    if time_block is None:
        TT = T if T <= 128 else 128
    else:
        TT = time_block
    n_blocks = pl.cdiv(T, TT)
    Tp = n_blocks * TT

    # Layout glue (plain JAX): time-major, pad T to a multiple of TT, flatten.
    x_tm = jnp.transpose(x, (1, 0, 2))                     # [T, B, I]
    if Tp != T:
        x_tm = jnp.pad(x_tm, ((0, Tp - T), (0, 0), (0, 0)))
    x_flat = x_tm.reshape(Tp * B, I)                       # [Tp*B, I]

    kernel = _make_gru_kernel(TT, B, H, output_classes)
    out_flat = pl.pallas_call(
        kernel,
        out_shape=jax.ShapeDtypeStruct((Tp * B, O), x.dtype),
        grid_spec=pltpu.PrefetchScalarGridSpec(
            num_scalar_prefetch=0,
            grid=(n_blocks,),
            in_specs=[
                pl.BlockSpec((TT * B, I), lambda t: (t, 0)),   # x block
                pl.BlockSpec((I, 3 * H), lambda t: (0, 0)),    # W_ih (pre-transposed)
                pl.BlockSpec((H, 3 * H), lambda t: (0, 0)),    # W_hh (pre-transposed)
                pl.BlockSpec((1, 3 * H), lambda t: (0, 0)),    # b_ih
                pl.BlockSpec((1, 3 * H), lambda t: (0, 0)),    # b_hh
                pl.BlockSpec((H, O), lambda t: (0, 0)),        # W_out (pre-transposed)
                pl.BlockSpec((1, O), lambda t: (0, 0)),        # b_out
            ],
            out_specs=pl.BlockSpec((TT * B, O), lambda t: (t, 0)),
            scratch_shapes=[
                pltpu.VMEM((B, H), jnp.float32),               # carried hidden state
                pltpu.VMEM((TT * B, 3 * H), jnp.float32),      # hoisted gi block
                pltpu.VMEM((TT * B, H), jnp.float32),          # hidden states of block
            ],
        ),
        compiler_params=pltpu.CompilerParams(
            dimension_semantics=("arbitrary",)),  # sequential recurrence over time
    )(x_flat, w_ih, w_hh, b_ih, b_hh, w_out, b_out)

    # Back to batch-first and split into per-group probability tensors.
    out = out_flat.reshape(Tp, B, O)[:T]                   # [T, B, O]
    out = jnp.transpose(out, (1, 0, 2))                    # [B, T, O]
    probs, c = [], 0
    for n_g in output_classes:
        probs.append(out[:, :, c:c + n_g])
        c += n_g
    return probs


# ----------------------------------------------------------------------------
# Pure-JAX reference (for correctness check)
# ----------------------------------------------------------------------------
def rnn_predictor_reference(x, params, output_classes):
    w_ih, w_hh, b_ih, b_hh, w_out, b_out = params
    B, T, I = x.shape
    H = w_hh.shape[0]

    def step(h, x_t):
        gi = x_t @ w_ih + b_ih[0]
        gh = h @ w_hh + b_hh[0]
        r = jax.nn.sigmoid(gi[:, :H] + gh[:, :H])
        z = jax.nn.sigmoid(gi[:, H:2 * H] + gh[:, H:2 * H])
        n = jnp.tanh(gi[:, 2 * H:] + r * gh[:, 2 * H:])
        h_new = (1.0 - z) * n + z * h
        return h_new, h_new

    h0 = jnp.zeros((B, H), jnp.float32)
    _, hs = jax.lax.scan(step, h0, jnp.transpose(x, (1, 0, 2)))
    hs = jnp.transpose(hs, (1, 0, 2))               # [B, T, H]
    logits = hs @ w_out + b_out[0]
    probs, c = [], 0
    for n_g in output_classes:
        probs.append(jax.nn.softmax(logits[:, :, c:c + n_g], axis=2))
        c += n_g
    return probs


# ----------------------------------------------------------------------------
# Deterministic parameter init (PyTorch-style uniform(-1/sqrt(H), 1/sqrt(H)))
# ----------------------------------------------------------------------------
def init_params(key, input_size, hidden_size, output_size):
    H = hidden_size
    ks = jax.random.split(key, 6)
    s = 1.0 / jnp.sqrt(H)
    w_ih = jax.random.uniform(ks[0], (input_size, 3 * H), jnp.float32, -s, s)
    w_hh = jax.random.uniform(ks[1], (H, 3 * H), jnp.float32, -s, s)
    b_ih = jax.random.uniform(ks[2], (1, 3 * H), jnp.float32, -s, s)
    b_hh = jax.random.uniform(ks[3], (1, 3 * H), jnp.float32, -s, s)
    w_out = jax.random.uniform(ks[4], (H, output_size), jnp.float32, -s, s)
    b_out = jax.random.uniform(ks[5], (1, output_size), jnp.float32, -s, s)
    return (w_ih, w_hh, b_ih, b_hh, w_out, b_out)


# ----------------------------------------------------------------------------
if __name__ == "__main__":
    # Small shapes consistent with the module's forward():
    #   inputs: [batch, seq, input_size], GRU hidden=32, output_classes=(3, 5)
    B, T, input_size, hidden_size = 2, 8, 16, 32
    output_classes = (3, 5)

    key = jax.random.PRNGKey(0)
    k_x, k_p = jax.random.split(key)
    x = jax.random.normal(k_x, (B, T, input_size), jnp.float32)
    params = init_params(k_p, input_size, hidden_size, sum(output_classes))

    probs = rnn_predictor_forward(x, params, output_classes)
    probs = jax.block_until_ready(probs)

    # correctness check against pure-JAX reference
    # (tolerance 2e-3: kernel uses the EUP approximate reciprocal in softmax)
    ref = rnn_predictor_reference(x, params, output_classes)
    for p, r in zip(probs, ref):
        assert p.shape == r.shape
        err = float(jnp.max(jnp.abs(p - r)))
        assert err < 2e-3, f"mismatch vs reference: {err}"

    print("KERNEL_OK")
</pallas_src>

<mosaic_0001>
module attributes {stable_mosaic.version = 11 : i64} {
  func.func @kernel(%arg0: i32, %arg1: memref<16x16xf32, #tpu.memory_space<vmem>>, %arg2: memref<16x96xf32, #tpu.memory_space<vmem>>, %arg3: memref<32x96xf32, #tpu.memory_space<vmem>>, %arg4: memref<1x96xf32, #tpu.memory_space<vmem>>, %arg5: memref<1x96xf32, #tpu.memory_space<vmem>>, %arg6: memref<32x8xf32, #tpu.memory_space<vmem>>, %arg7: memref<1x8xf32, #tpu.memory_space<vmem>>, %arg8: memref<16x8xf32, #tpu.memory_space<vmem>>, %arg9: memref<2x32xf32, #tpu.memory_space<vmem>>, %arg10: memref<16x96xf32, #tpu.memory_space<vmem>>, %arg11: memref<16x32xf32, #tpu.memory_space<vmem>>) attributes {dimension_semantics = [#tpu.dimension_semantics<arbitrary>], iteration_bounds = array<i64: 1>, scalar_prefetch = 0 : i64, scratch_operands = 3 : i64, tpu.core_type = #tpu.core_type<tc>, window_params = [{transform_indices = @transform_0, window_bounds = array<i64: 16, 16>}, {pipeline_mode = #tpu.pipeline_mode<synchronous>, transform_indices = @transform_1, window_bounds = array<i64: 16, 96>}, {pipeline_mode = #tpu.pipeline_mode<synchronous>, transform_indices = @transform_2, window_bounds = array<i64: 32, 96>}, {pipeline_mode = #tpu.pipeline_mode<synchronous>, transform_indices = @transform_3, window_bounds = array<i64: 1, 96>}, {pipeline_mode = #tpu.pipeline_mode<synchronous>, transform_indices = @transform_4, window_bounds = array<i64: 1, 96>}, {pipeline_mode = #tpu.pipeline_mode<synchronous>, transform_indices = @transform_5, window_bounds = array<i64: 32, 8>}, {pipeline_mode = #tpu.pipeline_mode<synchronous>, transform_indices = @transform_6, window_bounds = array<i64: 1, 8>}, {transform_indices = @transform_7, window_bounds = array<i64: 16, 8>}]} {
    %c0_i32 = arith.constant 0 : i32
    %0 = arith.cmpi eq, %arg0, %c0_i32 : i32
    %1 = arith.extui %0 : i1 to i32
    %c0_i32_0 = arith.constant 0 : i32
    %2 = arith.cmpi ne, %1, %c0_i32_0 : i32
    scf.if %2 {
      %cst_115 = arith.constant 0.000000e+00 : f32
      %338 = vector.broadcast %cst_115 : f32 to vector<2x32xf32>
      %c0_116 = arith.constant 0 : index
      %c0_117 = arith.constant 0 : index
      %339 = vector.load %arg9[%c0_116, %c0_117] : memref<2x32xf32, #tpu.memory_space<vmem>>, vector<2x32xf32>
      tpu.vector_store %arg9[%c0_116, %c0_117], %338 {strides = array<i32>} : memref<2x32xf32, #tpu.memory_space<vmem>>, vector<2x32xf32>,
    } else {
    }
    %c0 = arith.constant 0 : index
    %c0_1 = arith.constant 0 : index
    %3 = vector.load %arg1[%c0, %c0_1] : memref<16x16xf32, #tpu.memory_space<vmem>>, vector<16x16xf32>
    %c0_2 = arith.constant 0 : index
    %c0_3 = arith.constant 0 : index
    %4 = vector.load %arg2[%c0_2, %c0_3] : memref<16x96xf32, #tpu.memory_space<vmem>>, vector<16x96xf32>
    %cst = arith.constant dense<0.000000e+00> : vector<16x96xf32>
    %5 = tpu.matmul %3, %4, %cst {dimension_numbers = #tpu.dot_dimension_numbers<[1], [0], [0], [1], [0, 0, 1, 1], [], []>} : vector<16x16xf32>, vector<16x96xf32>, vector<16x96xf32> -> vector<16x96xf32>
    %c0_4 = arith.constant 0 : index
    %c0_5 = arith.constant 0 : index
    %6 = vector.load %arg4[%c0_4, %c0_5] : memref<1x96xf32, #tpu.memory_space<vmem>>, vector<1x96xf32>
    %7 = vector.broadcast %6 : vector<1x96xf32> to vector<16x96xf32>
    %8 = arith.addf %5, %7 : vector<16x96xf32>
    %c0_6 = arith.constant 0 : index
    %c0_7 = arith.constant 0 : index
    %9 = vector.load %arg10[%c0_6, %c0_7] : memref<16x96xf32, #tpu.memory_space<vmem>>, vector<16x96xf32>
    tpu.vector_store %arg10[%c0_6, %c0_7], %8 {strides = array<i32>} : memref<16x96xf32, #tpu.memory_space<vmem>>, vector<16x96xf32>,
    %c0_8 = arith.constant 0 : index
    %c0_9 = arith.constant 0 : index
    %10 = vector.load %arg9[%c0_8, %c0_9] : memref<2x32xf32, #tpu.memory_space<vmem>>, vector<2x32xf32>
    %c0_i32_10 = arith.constant 0 : i32
    %c2_i32 = arith.constant 2 : i32
    %11 = arith.muli %c0_i32_10, %c2_i32 : i32
    %12 = tpu.assume_multiple %11, 2 : i32
    %13 = arith.index_cast %12 : i32 to index
    %c0_11 = arith.constant 0 : index
    %14 = vector.load %arg10[%13, %c0_11] : memref<16x96xf32, #tpu.memory_space<vmem>>, vector<2x96xf32>
    %c0_12 = arith.constant 0 : index
    %c0_13 = arith.constant 0 : index
    %15 = vector.load %arg3[%c0_12, %c0_13] : memref<32x96xf32, #tpu.memory_space<vmem>>, vector<32x96xf32>
    %cst_14 = arith.constant dense<0.000000e+00> : vector<2x96xf32>
    %16 = tpu.matmul %10, %15, %cst_14 {dimension_numbers = #tpu.dot_dimension_numbers<[1], [0], [0], [1], [0, 0, 1, 1], [], []>} : vector<2x32xf32>, vector<32x96xf32>, vector<2x96xf32> -> vector<2x96xf32>
    %c0_15 = arith.constant 0 : index
    %c0_16 = arith.constant 0 : index
    %17 = vector.load %arg5[%c0_15, %c0_16] : memref<1x96xf32, #tpu.memory_space<vmem>>, vector<1x96xf32>
    %18 = vector.broadcast %17 : vector<1x96xf32> to vector<2x96xf32>
    %19 = arith.addf %16, %18 : vector<2x96xf32>
    %20 = vector.extract_strided_slice %14 {offsets = [0, 0], sizes = [2, 32], strides = [1, 1]} : vector<2x96xf32> to vector<2x32xf32>
    %21 = vector.extract_strided_slice %19 {offsets = [0, 0], sizes = [2, 32], strides = [1, 1]} : vector<2x96xf32> to vector<2x32xf32>
    %22 = arith.addf %20, %21 : vector<2x32xf32>
    %23 = arith.negf %22 : vector<2x32xf32>
    %24 = math.exp %23 : vector<2x32xf32>
    %cst_17 = arith.constant 1.000000e+00 : f32
    %25 = vector.broadcast %cst_17 : f32 to vector<2x32xf32>
    %26 = arith.addf %25, %24 : vector<2x32xf32>
    %27 = arith.divf %25, %26 : vector<2x32xf32>
    %28 = vector.extract_strided_slice %14 {offsets = [0, 32], sizes = [2, 32], strides = [1, 1]} : vector<2x96xf32> to vector<2x32xf32>
    %29 = vector.extract_strided_slice %19 {offsets = [0, 32], sizes = [2, 32], strides = [1, 1]} : vector<2x96xf32> to vector<2x32xf32>
    %30 = arith.addf %28, %29 : vector<2x32xf32>
    %31 = arith.negf %30 : vector<2x32xf32>
    %32 = math.exp %31 : vector<2x32xf32>
    %cst_18 = arith.constant 1.000000e+00 : f32
    %33 = vector.broadcast %cst_18 : f32 to vector<2x32xf32>
    %34 = arith.addf %33, %32 : vector<2x32xf32>
    %35 = arith.divf %33, %34 : vector<2x32xf32>
    %36 = vector.extract_strided_slice %14 {offsets = [0, 64], sizes = [2, 32], strides = [1, 1]} : vector<2x96xf32> to vector<2x32xf32>
    %37 = vector.extract_strided_slice %19 {offsets = [0, 64], sizes = [2, 32], strides = [1, 1]} : vector<2x96xf32> to vector<2x32xf32>
    %38 = arith.mulf %27, %37 : vector<2x32xf32>
    %39 = arith.addf %36, %38 : vector<2x32xf32>
    %40 = math.tanh %39 : vector<2x32xf32>
    %cst_19 = arith.constant 1.000000e+00 : f32
    %41 = vector.broadcast %cst_19 : f32 to vector<2x32xf32>
    %42 = arith.subf %41, %35 : vector<2x32xf32>
    %43 = arith.mulf %42, %40 : vector<2x32xf32>
    %44 = arith.mulf %35, %10 : vector<2x32xf32>
    %45 = arith.addf %43, %44 : vector<2x32xf32>
    %46 = arith.index_cast %12 : i32 to index
    %c0_20 = arith.constant 0 : index
    %47 = vector.load %arg11[%46, %c0_20] : memref<16x32xf32, #tpu.memory_space<vmem>>, vector<2x32xf32>
    tpu.vector_store %arg11[%46, %c0_20], %45 {strides = array<i32>} : memref<16x32xf32, #tpu.memory_space<vmem>>, vector<2x32xf32>,
    %c1_i32 = arith.constant 1 : i32
    %c2_i32_21 = arith.constant 2 : i32
    %48 = arith.muli %c1_i32, %c2_i32_21 : i32
    %49 = tpu.assume_multiple %48, 2 : i32
    %50 = arith.index_cast %49 : i32 to index
    %c0_22 = arith.constant 0 : index
    %51 = vector.load %arg10[%50, %c0_22] : memref<16x96xf32, #tpu.memory_space<vmem>>, vector<2x96xf32>
    %c0_23 = arith.constant 0 : index
    %c0_24 = arith.constant 0 : index
    %52 = vector.load %arg3[%c0_23, %c0_24] : memref<32x96xf32, #tpu.memory_space<vmem>>, vector<32x96xf32>
    %cst_25 = arith.constant dense<0.000000e+00> : vector<2x96xf32>
    %53 = tpu.matmul %45, %52, %cst_25 {dimension_numbers = #tpu.dot_dimension_numbers<[1], [0], [0], [1], [0, 0, 1, 1], [], []>} : vector<2x32xf32>, vector<32x96xf32>, vector<2x96xf32> -> vector<2x96xf32>
    %c0_26 = arith.constant 0 : index
    %c0_27 = arith.constant 0 : index
    %54 = vector.load %arg5[%c0_26, %c0_27] : memref<1x96xf32, #tpu.memory_space<vmem>>, vector<1x96xf32>
    %55 = vector.broadcast %54 : vector<1x96xf32> to vector<2x96xf32>
    %56 = arith.addf %53, %55 : vector<2x96xf32>
    %57 = vector.extract_strided_slice %51 {offsets = [0, 0], sizes = [2, 32], strides = [1, 1]} : vector<2x96xf32> to vector<2x32xf32>
    %58 = vector.extract_strided_slice %56 {offsets = [0, 0], sizes = [2, 32], strides = [1, 1]} : vector<2x96xf32> to vector<2x32xf32>
    %59 = arith.addf %57, %58 : vector<2x32xf32>
    %60 = arith.negf %59 : vector<2x32xf32>
    %61 = math.exp %60 : vector<2x32xf32>
    %cst_28 = arith.constant 1.000000e+00 : f32
    %62 = vector.broadcast %cst_28 : f32 to vector<2x32xf32>
    %63 = arith.addf %62, %61 : vector<2x32xf32>
    %64 = arith.divf %62, %63 : vector<2x32xf32>
    %65 = vector.extract_strided_slice %51 {offsets = [0, 32], sizes = [2, 32], strides = [1, 1]} : vector<2x96xf32> to vector<2x32xf32>
    %66 = vector.extract_strided_slice %56 {offsets = [0, 32], sizes = [2, 32], strides = [1, 1]} : vector<2x96xf32> to vector<2x32xf32>
    %67 = arith.addf %65, %66 : vector<2x32xf32>
    %68 = arith.negf %67 : vector<2x32xf32>
    %69 = math.exp %68 : vector<2x32xf32>
    %cst_29 = arith.constant 1.000000e+00 : f32
    %70 = vector.broadcast %cst_29 : f32 to vector<2x32xf32>
    %71 = arith.addf %70, %69 : vector<2x32xf32>
    %72 = arith.divf %70, %71 : vector<2x32xf32>
    %73 = vector.extract_strided_slice %51 {offsets = [0, 64], sizes = [2, 32], strides = [1, 1]} : vector<2x96xf32> to vector<2x32xf32>
    %74 = vector.extract_strided_slice %56 {offsets = [0, 64], sizes = [2, 32], strides = [1, 1]} : vector<2x96xf32> to vector<2x32xf32>
    %75 = arith.mulf %64, %74 : vector<2x32xf32>
    %76 = arith.addf %73, %75 : vector<2x32xf32>
    %77 = math.tanh %76 : vector<2x32xf32>
    %cst_30 = arith.constant 1.000000e+00 : f32
    %78 = vector.broadcast %cst_30 : f32 to vector<2x32xf32>
    %79 = arith.subf %78, %72 : vector<2x32xf32>
    %80 = arith.mulf %79, %77 : vector<2x32xf32>
    %81 = arith.mulf %72, %45 : vector<2x32xf32>
    %82 = arith.addf %80, %81 : vector<2x32xf32>
    %83 = arith.index_cast %49 : i32 to index
    %c0_31 = arith.constant 0 : index
    %84 = vector.load %arg11[%83, %c0_31] : memref<16x32xf32, #tpu.memory_space<vmem>>, vector<2x32xf32>
    tpu.vector_store %arg11[%83, %c0_31], %82 {strides = array<i32>} : memref<16x32xf32, #tpu.memory_space<vmem>>, vector<2x32xf32>,
    %c2_i32_32 = arith.constant 2 : i32
    %c2_i32_33 = arith.constant 2 : i32
    %85 = arith.muli %c2_i32_32, %c2_i32_33 : i32
    %86 = tpu.assume_multiple %85, 2 : i32
    %87 = arith.index_cast %86 : i32 to index
    %c0_34 = arith.constant 0 : index
    %88 = vector.load %arg10[%87, %c0_34] : memref<16x96xf32, #tpu.memory_space<vmem>>, vector<2x96xf32>
    %c0_35 = arith.constant 0 : index
    %c0_36 = arith.constant 0 : index
    %89 = vector.load %arg3[%c0_35, %c0_36] : memref<32x96xf32, #tpu.memory_space<vmem>>, vector<32x96xf32>
    %cst_37 = arith.constant dense<0.000000e+00> : vector<2x96xf32>
    %90 = tpu.matmul %82, %89, %cst_37 {dimension_numbers = #tpu.dot_dimension_numbers<[1], [0], [0], [1], [0, 0, 1, 1], [], []>} : vector<2x32xf32>, vector<32x96xf32>, vector<2x96xf32> -> vector<2x96xf32>
    %c0_38 = arith.constant 0 : index
    %c0_39 = arith.constant 0 : index
    %91 = vector.load %arg5[%c0_38, %c0_39] : memref<1x96xf32, #tpu.memory_space<vmem>>, vector<1x96xf32>
    %92 = vector.broadcast %91 : vector<1x96xf32> to vector<2x96xf32>
    %93 = arith.addf %90, %92 : vector<2x96xf32>
    %94 = vector.extract_strided_slice %88 {offsets = [0, 0], sizes = [2, 32], strides = [1, 1]} : vector<2x96xf32> to vector<2x32xf32>
    %95 = vector.extract_strided_slice %93 {offsets = [0, 0], sizes = [2, 32], strides = [1, 1]} : vector<2x96xf32> to vector<2x32xf32>
    %96 = arith.addf %94, %95 : vector<2x32xf32>
    %97 = arith.negf %96 : vector<2x32xf32>
    %98 = math.exp %97 : vector<2x32xf32>
    %cst_40 = arith.constant 1.000000e+00 : f32
    %99 = vector.broadcast %cst_40 : f32 to vector<2x32xf32>
    %100 = arith.addf %99, %98 : vector<2x32xf32>
    %101 = arith.divf %99, %100 : vector<2x32xf32>
    %102 = vector.extract_strided_slice %88 {offsets = [0, 32], sizes = [2, 32], strides = [1, 1]} : vector<2x96xf32> to vector<2x32xf32>
    %103 = vector.extract_strided_slice %93 {offsets = [0, 32], sizes = [2, 32], strides = [1, 1]} : vector<2x96xf32> to vector<2x32xf32>
    %104 = arith.addf %102, %103 : vector<2x32xf32>
    %105 = arith.negf %104 : vector<2x32xf32>
    %106 = math.exp %105 : vector<2x32xf32>
    %cst_41 = arith.constant 1.000000e+00 : f32
    %107 = vector.broadcast %cst_41 : f32 to vector<2x32xf32>
    %108 = arith.addf %107, %106 : vector<2x32xf32>
    %109 = arith.divf %107, %108 : vector<2x32xf32>
    %110 = vector.extract_strided_slice %88 {offsets = [0, 64], sizes = [2, 32], strides = [1, 1]} : vector<2x96xf32> to vector<2x32xf32>
    %111 = vector.extract_strided_slice %93 {offsets = [0, 64], sizes = [2, 32], strides = [1, 1]} : vector<2x96xf32> to vector<2x32xf32>
    %112 = arith.mulf %101, %111 : vector<2x32xf32>
    %113 = arith.addf %110, %112 : vector<2x32xf32>
    %114 = math.tanh %113 : vector<2x32xf32>
    %cst_42 = arith.constant 1.000000e+00 : f32
    %115 = vector.broadcast %cst_42 : f32 to vector<2x32xf32>
    %116 = arith.subf %115, %109 : vector<2x32xf32>
    %117 = arith.mulf %116, %114 : vector<2x32xf32>
    %118 = arith.mulf %109, %82 : vector<2x32xf32>
    %119 = arith.addf %117, %118 : vector<2x32xf32>
    %120 = arith.index_cast %86 : i32 to index
    %c0_43 = arith.constant 0 : index
    %121 = vector.load %arg11[%120, %c0_43] : memref<16x32xf32, #tpu.memory_space<vmem>>, vector<2x32xf32>
    tpu.vector_store %arg11[%120, %c0_43], %119 {strides = array<i32>} : memref<16x32xf32, #tpu.memory_space<vmem>>, vector<2x32xf32>,
    %c3_i32 = arith.constant 3 : i32
    %c2_i32_44 = arith.constant 2 : i32
    %122 = arith.muli %c3_i32, %c2_i32_44 : i32
    %123 = tpu.assume_multiple %122, 2 : i32
    %124 = arith.index_cast %123 : i32 to index
    %c0_45 = arith.constant 0 : index
    %125 = vector.load %arg10[%124, %c0_45] : memref<16x96xf32, #tpu.memory_space<vmem>>, vector<2x96xf32>
    %c0_46 = arith.constant 0 : index
    %c0_47 = arith.constant 0 : index
    %126 = vector.load %arg3[%c0_46, %c0_47] : memref<32x96xf32, #tpu.memory_space<vmem>>, vector<32x96xf32>
    %cst_48 = arith.constant dense<0.000000e+00> : vector<2x96xf32>
    %127 = tpu.matmul %119, %126, %cst_48 {dimension_numbers = #tpu.dot_dimension_numbers<[1], [0], [0], [1], [0, 0, 1, 1], [], []>} : vector<2x32xf32>, vector<32x96xf32>, vector<2x96xf32> -> vector<2x96xf32>
    %c0_49 = arith.constant 0 : index
    %c0_50 = arith.constant 0 : index
    %128 = vector.load %arg5[%c0_49, %c0_50] : memref<1x96xf32, #tpu.memory_space<vmem>>, vector<1x96xf32>
    %129 = vector.broadcast %128 : vector<1x96xf32> to vector<2x96xf32>
    %130 = arith.addf %127, %129 : vector<2x96xf32>
    %131 = vector.extract_strided_slice %125 {offsets = [0, 0], sizes = [2, 32], strides = [1, 1]} : vector<2x96xf32> to vector<2x32xf32>
    %132 = vector.extract_strided_slice %130 {offsets = [0, 0], sizes = [2, 32], strides = [1, 1]} : vector<2x96xf32> to vector<2x32xf32>
    %133 = arith.addf %131, %132 : vector<2x32xf32>
    %134 = arith.negf %133 : vector<2x32xf32>
    %135 = math.exp %134 : vector<2x32xf32>
    %cst_51 = arith.constant 1.000000e+00 : f32
    %136 = vector.broadcast %cst_51 : f32 to vector<2x32xf32>
    %137 = arith.addf %136, %135 : vector<2x32xf32>
    %138 = arith.divf %136, %137 : vector<2x32xf32>
    %139 = vector.extract_strided_slice %125 {offsets = [0, 32], sizes = [2, 32], strides = [1, 1]} : vector<2x96xf32> to vector<2x32xf32>
    %140 = vector.extract_strided_slice %130 {offsets = [0, 32], sizes = [2, 32], strides = [1, 1]} : vector<2x96xf32> to vector<2x32xf32>
    %141 = arith.addf %139, %140 : vector<2x32xf32>
    %142 = arith.negf %141 : vector<2x32xf32>
    %143 = math.exp %142 : vector<2x32xf32>
    %cst_52 = arith.constant 1.000000e+00 : f32
    %144 = vector.broadcast %cst_52 : f32 to vector<2x32xf32>
    %145 = arith.addf %144, %143 : vector<2x32xf32>
    %146 = arith.divf %144, %145 : vector<2x32xf32>
    %147 = vector.extract_strided_slice %125 {offsets = [0, 64], sizes = [2, 32], strides = [1, 1]} : vector<2x96xf32> to vector<2x32xf32>
    %148 = vector.extract_strided_slice %130 {offsets = [0, 64], sizes = [2, 32], strides = [1, 1]} : vector<2x96xf32> to vector<2x32xf32>
    %149 = arith.mulf %138, %148 : vector<2x32xf32>
    %150 = arith.addf %147, %149 : vector<2x32xf32>
    %151 = math.tanh %150 : vector<2x32xf32>
    %cst_53 = arith.constant 1.000000e+00 : f32
    %152 = vector.broadcast %cst_53 : f32 to vector<2x32xf32>
    %153 = arith.subf %152, %146 : vector<2x32xf32>
    %154 = arith.mulf %153, %151 : vector<2x32xf32>
    %155 = arith.mulf %146, %119 : vector<2x32xf32>
    %156 = arith.addf %154, %155 : vector<2x32xf32>
    %157 = arith.index_cast %123 : i32 to index
    %c0_54 = arith.constant 0 : index
    %158 = vector.load %arg11[%157, %c0_54] : memref<16x32xf32, #tpu.memory_space<vmem>>, vector<2x32xf32>
    tpu.vector_store %arg11[%157, %c0_54], %156 {strides = array<i32>} : memref<16x32xf32, #tpu.memory_space<vmem>>, vector<2x32xf32>,
    %c4_i32 = arith.constant 4 : i32
    %c2_i32_55 = arith.constant 2 : i32
    %159 = arith.muli %c4_i32, %c2_i32_55 : i32
    %160 = tpu.assume_multiple %159, 2 : i32
    %161 = arith.index_cast %160 : i32 to index
    %c0_56 = arith.constant 0 : index
    %162 = vector.load %arg10[%161, %c0_56] : memref<16x96xf32, #tpu.memory_space<vmem>>, vector<2x96xf32>
    %c0_57 = arith.constant 0 : index
    %c0_58 = arith.constant 0 : index
    %163 = vector.load %arg3[%c0_57, %c0_58] : memref<32x96xf32, #tpu.memory_space<vmem>>, vector<32x96xf32>
    %cst_59 = arith.constant dense<0.000000e+00> : vector<2x96xf32>
    %164 = tpu.matmul %156, %163, %cst_59 {dimension_numbers = #tpu.dot_dimension_numbers<[1], [0], [0], [1], [0, 0, 1, 1], [], []>} : vector<2x32xf32>, vector<32x96xf32>, vector<2x96xf32> -> vector<2x96xf32>
    %c0_60 = arith.constant 0 : index
    %c0_61 = arith.constant 0 : index
    %165 = vector.load %arg5[%c0_60, %c0_61] : memref<1x96xf32, #tpu.memory_space<vmem>>, vector<1x96xf32>
    %166 = vector.broadcast %165 : vector<1x96xf32> to vector<2x96xf32>
    %167 = arith.addf %164, %166 : vector<2x96xf32>
    %168 = vector.extract_strided_slice %162 {offsets = [0, 0], sizes = [2, 32], strides = [1, 1]} : vector<2x96xf32> to vector<2x32xf32>
    %169 = vector.extract_strided_slice %167 {offsets = [0, 0], sizes = [2, 32], strides = [1, 1]} : vector<2x96xf32> to vector<2x32xf32>
    %170 = arith.addf %168, %169 : vector<2x32xf32>
    %171 = arith.negf %170 : vector<2x32xf32>
    %172 = math.exp %171 : vector<2x32xf32>
    %cst_62 = arith.constant 1.000000e+00 : f32
    %173 = vector.broadcast %cst_62 : f32 to vector<2x32xf32>
    %174 = arith.addf %173, %172 : vector<2x32xf32>
    %175 = arith.divf %173, %174 : vector<2x32xf32>
    %176 = vector.extract_strided_slice %162 {offsets = [0, 32], sizes = [2, 32], strides = [1, 1]} : vector<2x96xf32> to vector<2x32xf32>
    %177 = vector.extract_strided_slice %167 {offsets = [0, 32], sizes = [2, 32], strides = [1, 1]} : vector<2x96xf32> to vector<2x32xf32>
    %178 = arith.addf %176, %177 : vector<2x32xf32>
    %179 = arith.negf %178 : vector<2x32xf32>
    %180 = math.exp %179 : vector<2x32xf32>
    %cst_63 = arith.constant 1.000000e+00 : f32
    %181 = vector.broadcast %cst_63 : f32 to vector<2x32xf32>
    %182 = arith.addf %181, %180 : vector<2x32xf32>
    %183 = arith.divf %181, %182 : vector<2x32xf32>
    %184 = vector.extract_strided_slice %162 {offsets = [0, 64], sizes = [2, 32], strides = [1, 1]} : vector<2x96xf32> to vector<2x32xf32>
    %185 = vector.extract_strided_slice %167 {offsets = [0, 64], sizes = [2, 32], strides = [1, 1]} : vector<2x96xf32> to vector<2x32xf32>
    %186 = arith.mulf %175, %185 : vector<2x32xf32>
    %187 = arith.addf %184, %186 : vector<2x32xf32>
    %188 = math.tanh %187 : vector<2x32xf32>
    %cst_64 = arith.constant 1.000000e+00 : f32
    %189 = vector.broadcast %cst_64 : f32 to vector<2x32xf32>
    %190 = arith.subf %189, %183 : vector<2x32xf32>
    %191 = arith.mulf %190, %188 : vector<2x32xf32>
    %192 = arith.mulf %183, %156 : vector<2x32xf32>
    %193 = arith.addf %191, %192 : vector<2x32xf32>
    %194 = arith.index_cast %160 : i32 to index
    %c0_65 = arith.constant 0 : index
    %195 = vector.load %arg11[%194, %c0_65] : memref<16x32xf32, #tpu.memory_space<vmem>>, vector<2x32xf32>
    tpu.vector_store %arg11[%194, %c0_65], %193 {strides = array<i32>} : memref<16x32xf32, #tpu.memory_space<vmem>>, vector<2x32xf32>,
    %c5_i32 = arith.constant 5 : i32
    %c2_i32_66 = arith.constant 2 : i32
    %196 = arith.muli %c5_i32, %c2_i32_66 : i32
    %197 = tpu.assume_multiple %196, 2 : i32
    %198 = arith.index_cast %197 : i32 to index
    %c0_67 = arith.constant 0 : index
    %199 = vector.load %arg10[%198, %c0_67] : memref<16x96xf32, #tpu.memory_space<vmem>>, vector<2x96xf32>
    %c0_68 = arith.constant 0 : index
    %c0_69 = arith.constant 0 : index
    %200 = vector.load %arg3[%c0_68, %c0_69] : memref<32x96xf32, #tpu.memory_space<vmem>>, vector<32x96xf32>
    %cst_70 = arith.constant dense<0.000000e+00> : vector<2x96xf32>
    %201 = tpu.matmul %193, %200, %cst_70 {dimension_numbers = #tpu.dot_dimension_numbers<[1], [0], [0], [1], [0, 0, 1, 1], [], []>} : vector<2x32xf32>, vector<32x96xf32>, vector<2x96xf32> -> vector<2x96xf32>
    %c0_71 = arith.constant 0 : index
    %c0_72 = arith.constant 0 : index
    %202 = vector.load %arg5[%c0_71, %c0_72] : memref<1x96xf32, #tpu.memory_space<vmem>>, vector<1x96xf32>
    %203 = vector.broadcast %202 : vector<1x96xf32> to vector<2x96xf32>
    %204 = arith.addf %201, %203 : vector<2x96xf32>
    %205 = vector.extract_strided_slice %199 {offsets = [0, 0], sizes = [2, 32], strides = [1, 1]} : vector<2x96xf32> to vector<2x32xf32>
    %206 = vector.extract_strided_slice %204 {offsets = [0, 0], sizes = [2, 32], strides = [1, 1]} : vector<2x96xf32> to vector<2x32xf32>
    %207 = arith.addf %205, %206 : vector<2x32xf32>
    %208 = arith.negf %207 : vector<2x32xf32>
    %209 = math.exp %208 : vector<2x32xf32>
    %cst_73 = arith.constant 1.000000e+00 : f32
    %210 = vector.broadcast %cst_73 : f32 to vector<2x32xf32>
    %211 = arith.addf %210, %209 : vector<2x32xf32>
    %212 = arith.divf %210, %211 : vector<2x32xf32>
    %213 = vector.extract_strided_slice %199 {offsets = [0, 32], sizes = [2, 32], strides = [1, 1]} : vector<2x96xf32> to vector<2x32xf32>
    %214 = vector.extract_strided_slice %204 {offsets = [0, 32], sizes = [2, 32], strides = [1, 1]} : vector<2x96xf32> to vector<2x32xf32>
    %215 = arith.addf %213, %214 : vector<2x32xf32>
    %216 = arith.negf %215 : vector<2x32xf32>
    %217 = math.exp %216 : vector<2x32xf32>
    %cst_74 = arith.constant 1.000000e+00 : f32
    %218 = vector.broadcast %cst_74 : f32 to vector<2x32xf32>
    %219 = arith.addf %218, %217 : vector<2x32xf32>
    %220 = arith.divf %218, %219 : vector<2x32xf32>
    %221 = vector.extract_strided_slice %199 {offsets = [0, 64], sizes = [2, 32], strides = [1, 1]} : vector<2x96xf32> to vector<2x32xf32>
    %222 = vector.extract_strided_slice %204 {offsets = [0, 64], sizes = [2, 32], strides = [1, 1]} : vector<2x96xf32> to vector<2x32xf32>
    %223 = arith.mulf %212, %222 : vector<2x32xf32>
    %224 = arith.addf %221, %223 : vector<2x32xf32>
    %225 = math.tanh %224 : vector<2x32xf32>
    %cst_75 = arith.constant 1.000000e+00 : f32
    %226 = vector.broadcast %cst_75 : f32 to vector<2x32xf32>
    %227 = arith.subf %226, %220 : vector<2x32xf32>
    %228 = arith.mulf %227, %225 : vector<2x32xf32>
    %229 = arith.mulf %220, %193 : vector<2x32xf32>
    %230 = arith.addf %228, %229 : vector<2x32xf32>
    %231 = arith.index_cast %197 : i32 to index
    %c0_76 = arith.constant 0 : index
    %232 = vector.load %arg11[%231, %c0_76] : memref<16x32xf32, #tpu.memory_space<vmem>>, vector<2x32xf32>
    tpu.vector_store %arg11[%231, %c0_76], %230 {strides = array<i32>} : memref<16x32xf32, #tpu.memory_space<vmem>>, vector<2x32xf32>,
    %c6_i32 = arith.constant 6 : i32
    %c2_i32_77 = arith.constant 2 : i32
    %233 = arith.muli %c6_i32, %c2_i32_77 : i32
    %234 = tpu.assume_multiple %233, 2 : i32
    %235 = arith.index_cast %234 : i32 to index
    %c0_78 = arith.constant 0 : index
    %236 = vector.load %arg10[%235, %c0_78] : memref<16x96xf32, #tpu.memory_space<vmem>>, vector<2x96xf32>
    %c0_79 = arith.constant 0 : index
    %c0_80 = arith.constant 0 : index
    %237 = vector.load %arg3[%c0_79, %c0_80] : memref<32x96xf32, #tpu.memory_space<vmem>>, vector<32x96xf32>
    %cst_81 = arith.constant dense<0.000000e+00> : vector<2x96xf32>
    %238 = tpu.matmul %230, %237, %cst_81 {dimension_numbers = #tpu.dot_dimension_numbers<[1], [0], [0], [1], [0, 0, 1, 1], [], []>} : vector<2x32xf32>, vector<32x96xf32>, vector<2x96xf32> -> vector<2x96xf32>
    %c0_82 = arith.constant 0 : index
    %c0_83 = arith.constant 0 : index
    %239 = vector.load %arg5[%c0_82, %c0_83] : memref<1x96xf32, #tpu.memory_space<vmem>>, vector<1x96xf32>
    %240 = vector.broadcast %239 : vector<1x96xf32> to vector<2x96xf32>
    %241 = arith.addf %238, %240 : vector<2x96xf32>
    %242 = vector.extract_strided_slice %236 {offsets = [0, 0], sizes = [2, 32], strides = [1, 1]} : vector<2x96xf32> to vector<2x32xf32>
    %243 = vector.extract_strided_slice %241 {offsets = [0, 0], sizes = [2, 32], strides = [1, 1]} : vector<2x96xf32> to vector<2x32xf32>
    %244 = arith.addf %242, %243 : vector<2x32xf32>
    %245 = arith.negf %244 : vector<2x32xf32>
    %246 = math.exp %245 : vector<2x32xf32>
    %cst_84 = arith.constant 1.000000e+00 : f32
    %247 = vector.broadcast %cst_84 : f32 to vector<2x32xf32>
    %248 = arith.addf %247, %246 : vector<2x32xf32>
    %249 = arith.divf %247, %248 : vector<2x32xf32>
    %250 = vector.extract_strided_slice %236 {offsets = [0, 32], sizes = [2, 32], strides = [1, 1]} : vector<2x96xf32> to vector<2x32xf32>
    %251 = vector.extract_strided_slice %241 {offsets = [0, 32], sizes = [2, 32], strides = [1, 1]} : vector<2x96xf32> to vector<2x32xf32>
    %252 = arith.addf %250, %251 : vector<2x32xf32>
    %253 = arith.negf %252 : vector<2x32xf32>
    %254 = math.exp %253 : vector<2x32xf32>
    %cst_85 = arith.constant 1.000000e+00 : f32
    %255 = vector.broadcast %cst_85 : f32 to vector<2x32xf32>
    %256 = arith.addf %255, %254 : vector<2x32xf32>
    %257 = arith.divf %255, %256 : vector<2x32xf32>
    %258 = vector.extract_strided_slice %236 {offsets = [0, 64], sizes = [2, 32], strides = [1, 1]} : vector<2x96xf32> to vector<2x32xf32>
    %259 = vector.extract_strided_slice %241 {offsets = [0, 64], sizes = [2, 32], strides = [1, 1]} : vector<2x96xf32> to vector<2x32xf32>
    %260 = arith.mulf %249, %259 : vector<2x32xf32>
    %261 = arith.addf %258, %260 : vector<2x32xf32>
    %262 = math.tanh %261 : vector<2x32xf32>
    %cst_86 = arith.constant 1.000000e+00 : f32
    %263 = vector.broadcast %cst_86 : f32 to vector<2x32xf32>
    %264 = arith.subf %263, %257 : vector<2x32xf32>
    %265 = arith.mulf %264, %262 : vector<2x32xf32>
    %266 = arith.mulf %257, %230 : vector<2x32xf32>
    %267 = arith.addf %265, %266 : vector<2x32xf32>
    %268 = arith.index_cast %234 : i32 to index
    %c0_87 = arith.constant 0 : index
    %269 = vector.load %arg11[%268, %c0_87] : memref<16x32xf32, #tpu.memory_space<vmem>>, vector<2x32xf32>
    tpu.vector_store %arg11[%268, %c0_87], %267 {strides = array<i32>} : memref<16x32xf32, #tpu.memory_space<vmem>>, vector<2x32xf32>,
    %c7_i32 = arith.constant 7 : i32
    %c2_i32_88 = arith.constant 2 : i32
    %270 = arith.muli %c7_i32, %c2_i32_88 : i32
    %271 = tpu.assume_multiple %270, 2 : i32
    %272 = arith.index_cast %271 : i32 to index
    %c0_89 = arith.constant 0 : index
    %273 = vector.load %arg10[%272, %c0_89] : memref<16x96xf32, #tpu.memory_space<vmem>>, vector<2x96xf32>
    %c0_90 = arith.constant 0 : index
    %c0_91 = arith.constant 0 : index
    %274 = vector.load %arg3[%c0_90, %c0_91] : memref<32x96xf32, #tpu.memory_space<vmem>>, vector<32x96xf32>
    %cst_92 = arith.constant dense<0.000000e+00> : vector<2x96xf32>
    %275 = tpu.matmul %267, %274, %cst_92 {dimension_numbers = #tpu.dot_dimension_numbers<[1], [0], [0], [1], [0, 0, 1, 1], [], []>} : vector<2x32xf32>, vector<32x96xf32>, vector<2x96xf32> -> vector<2x96xf32>
    %c0_93 = arith.constant 0 : index
    %c0_94 = arith.constant 0 : index
    %276 = vector.load %arg5[%c0_93, %c0_94] : memref<1x96xf32, #tpu.memory_space<vmem>>, vector<1x96xf32>
    %277 = vector.broadcast %276 : vector<1x96xf32> to vector<2x96xf32>
    %278 = arith.addf %275, %277 : vector<2x96xf32>
    %279 = vector.extract_strided_slice %273 {offsets = [0, 0], sizes = [2, 32], strides = [1, 1]} : vector<2x96xf32> to vector<2x32xf32>
    %280 = vector.extract_strided_slice %278 {offsets = [0, 0], sizes = [2, 32], strides = [1, 1]} : vector<2x96xf32> to vector<2x32xf32>
    %281 = arith.addf %279, %280 : vector<2x32xf32>
    %282 = arith.negf %281 : vector<2x32xf32>
    %283 = math.exp %282 : vector<2x32xf32>
    %cst_95 = arith.constant 1.000000e+00 : f32
    %284 = vector.broadcast %cst_95 : f32 to vector<2x32xf32>
    %285 = arith.addf %284, %283 : vector<2x32xf32>
    %286 = arith.divf %284, %285 : vector<2x32xf32>
    %287 = vector.extract_strided_slice %273 {offsets = [0, 32], sizes = [2, 32], strides = [1, 1]} : vector<2x96xf32> to vector<2x32xf32>
    %288 = vector.extract_strided_slice %278 {offsets = [0, 32], sizes = [2, 32], strides = [1, 1]} : vector<2x96xf32> to vector<2x32xf32>
    %289 = arith.addf %287, %288 : vector<2x32xf32>
    %290 = arith.negf %289 : vector<2x32xf32>
    %291 = math.exp %290 : vector<2x32xf32>
    %cst_96 = arith.constant 1.000000e+00 : f32
    %292 = vector.broadcast %cst_96 : f32 to vector<2x32xf32>
    %293 = arith.addf %292, %291 : vector<2x32xf32>
    %294 = arith.divf %292, %293 : vector<2x32xf32>
    %295 = vector.extract_strided_slice %273 {offsets = [0, 64], sizes = [2, 32], strides = [1, 1]} : vector<2x96xf32> to vector<2x32xf32>
    %296 = vector.extract_strided_slice %278 {offsets = [0, 64], sizes = [2, 32], strides = [1, 1]} : vector<2x96xf32> to vector<2x32xf32>
    %297 = arith.mulf %286, %296 : vector<2x32xf32>
    %298 = arith.addf %295, %297 : vector<2x32xf32>
    %299 = math.tanh %298 : vector<2x32xf32>
    %cst_97 = arith.constant 1.000000e+00 : f32
    %300 = vector.broadcast %cst_97 : f32 to vector<2x32xf32>
    %301 = arith.subf %300, %294 : vector<2x32xf32>
    %302 = arith.mulf %301, %299 : vector<2x32xf32>
    %303 = arith.mulf %294, %267 : vector<2x32xf32>
    %304 = arith.addf %302, %303 : vector<2x32xf32>
    %305 = arith.index_cast %271 : i32 to index
    %c0_98 = arith.constant 0 : index
    %306 = vector.load %arg11[%305, %c0_98] : memref<16x32xf32, #tpu.memory_space<vmem>>, vector<2x32xf32>
    tpu.vector_store %arg11[%305, %c0_98], %304 {strides = array<i32>} : memref<16x32xf32, #tpu.memory_space<vmem>>, vector<2x32xf32>,
    %c8_i32 = arith.constant 8 : i32
    %c0_99 = arith.constant 0 : index
    %c0_100 = arith.constant 0 : index
    %307 = vector.load %arg9[%c0_99, %c0_100] : memref<2x32xf32, #tpu.memory_space<vmem>>, vector<2x32xf32>
    tpu.vector_store %arg9[%c0_99, %c0_100], %304 {strides = array<i32>} : memref<2x32xf32, #tpu.memory_space<vmem>>, vector<2x32xf32>,
    %c0_101 = arith.constant 0 : index
    %c0_102 = arith.constant 0 : index
    %308 = vector.load %arg11[%c0_101, %c0_102] : memref<16x32xf32, #tpu.memory_space<vmem>>, vector<16x32xf32>
    %c0_103 = arith.constant 0 : index
    %c0_104 = arith.constant 0 : index
    %309 = vector.load %arg6[%c0_103, %c0_104] : memref<32x8xf32, #tpu.memory_space<vmem>>, vector<32x8xf32>
    %cst_105 = arith.constant dense<0.000000e+00> : vector<16x8xf32>
    %310 = tpu.matmul %308, %309, %cst_105 {dimension_numbers = #tpu.dot_dimension_numbers<[1], [0], [0], [1], [0, 0, 1, 1], [], []>} : vector<16x32xf32>, vector<32x8xf32>, vector<16x8xf32> -> vector<16x8xf32>
    %c0_106 = arith.constant 0 : index
    %c0_107 = arith.constant 0 : index
    %311 = vector.load %arg7[%c0_106, %c0_107] : memref<1x8xf32, #tpu.memory_space<vmem>>, vector<1x8xf32>
    %312 = vector.broadcast %311 : vector<1x8xf32> to vector<16x8xf32>
    %313 = arith.addf %310, %312 : vector<16x8xf32>
    %314 = vector.extract_strided_slice %313 {offsets = [0, 0], sizes = [16, 3], strides = [1, 1]} : vector<16x8xf32> to vector<16x3xf32>
    %cst_108 = arith.constant dense<0xFF800000> : vector<16xf32>
    %315 = vector.multi_reduction <maximumf>, %314, %cst_108 [1] : vector<16x3xf32> to vector<16xf32>
    %316 = vector.shape_cast %315 : vector<16xf32> to vector<16x1xf32>
    %317 = vector.broadcast %316 : vector<16x1xf32> to vector<16x3xf32>
    %318 = arith.subf %314, %317 : vector<16x3xf32>
    %319 = math.exp %318 : vector<16x3xf32>
    %cst_109 = arith.constant dense<0.000000e+00> : vector<16xf32>
    %320 = vector.multi_reduction <add>, %319, %cst_109 [1] : vector<16x3xf32> to vector<16xf32>
    %321 = vector.shape_cast %320 : vector<16xf32> to vector<16x1xf32>
    %322 = tpu.reciprocal %321 {approx = true} : vector<16x1xf32> -> vector<16x1xf32>
    %323 = vector.broadcast %322 : vector<16x1xf32> to vector<16x3xf32>
    %324 = arith.mulf %319, %323 : vector<16x3xf32>
    %c0_110 = arith.constant 0 : index
    %c0_111 = arith.constant 0 : index
    %325 = vector.load %arg8[%c0_110, %c0_111] : memref<16x8xf32, #tpu.memory_space<vmem>>, vector<16x3xf32>
    tpu.vector_store %arg8[%c0_110, %c0_111], %324 {strides = array<i32>} : memref<16x8xf32, #tpu.memory_space<vmem>>, vector<16x3xf32>,
    %326 = vector.extract_strided_slice %313 {offsets = [0, 3], sizes = [16, 5], strides = [1, 1]} : vector<16x8xf32> to vector<16x5xf32>
    %cst_112 = arith.constant dense<0xFF800000> : vector<16xf32>
    %327 = vector.multi_reduction <maximumf>, %326, %cst_112 [1] : vector<16x5xf32> to vector<16xf32>
    %328 = vector.shape_cast %327 : vector<16xf32> to vector<16x1xf32>
    %329 = vector.broadcast %328 : vector<16x1xf32> to vector<16x5xf32>
    %330 = arith.subf %326, %329 : vector<16x5xf32>
    %331 = math.exp %330 : vector<16x5xf32>
    %cst_113 = arith.constant dense<0.000000e+00> : vector<16xf32>
    %332 = vector.multi_reduction <add>, %331, %cst_113 [1] : vector<16x5xf32> to vector<16xf32>
    %333 = vector.shape_cast %332 : vector<16xf32> to vector<16x1xf32>
    %334 = tpu.reciprocal %333 {approx = true} : vector<16x1xf32> -> vector<16x1xf32>
    %335 = vector.broadcast %334 : vector<16x1xf32> to vector<16x5xf32>
    %336 = arith.mulf %331, %335 : vector<16x5xf32>
    %c0_114 = arith.constant 0 : index
    %c3 = arith.constant 3 : index
    %337 = vector.load %arg8[%c0_114, %c3] : memref<16x8xf32, #tpu.memory_space<vmem>>, vector<16x5xf32>
    tpu.vector_store %arg8[%c0_114, %c3], %336 {strides = array<i32>} : memref<16x8xf32, #tpu.memory_space<vmem>>, vector<16x5xf32>,
    return
  }
  func.func @transform_0(%arg0: i32) -> (i32, i32) {
    %c0_i32 = arith.constant 0 : i32
    %c0_i32_0 = arith.constant 0 : i32
    return %arg0, %c0_i32 : i32, i32
  }
  func.func @transform_1(%arg0: i32) -> (i32, i32) {
    %c0_i32 = arith.constant 0 : i32
    %c0_i32_0 = arith.constant 0 : i32
    %c0_i32_1 = arith.constant 0 : i32
    return %c0_i32, %c0_i32_0 : i32, i32
  }
  func.func @transform_2(%arg0: i32) -> (i32, i32) {
    %c0_i32 = arith.constant 0 : i32
    %c0_i32_0 = arith.constant 0 : i32
    %c0_i32_1 = arith.constant 0 : i32
    return %c0_i32, %c0_i32_0 : i32, i32
  }
  func.func @transform_3(%arg0: i32) -> (i32, i32) {
    %c0_i32 = arith.constant 0 : i32
    %c0_i32_0 = arith.constant 0 : i32
    %c0_i32_1 = arith.constant 0 : i32
    return %c0_i32, %c0_i32_0 : i32, i32
  }
  func.func @transform_4(%arg0: i32) -> (i32, i32) {
    %c0_i32 = arith.constant 0 : i32
    %c0_i32_0 = arith.constant 0 : i32
    %c0_i32_1 = arith.constant 0 : i32
    return %c0_i32, %c0_i32_0 : i32, i32
  }
  func.func @transform_5(%arg0: i32) -> (i32, i32) {
    %c0_i32 = arith.constant 0 : i32
    %c0_i32_0 = arith.constant 0 : i32
    %c0_i32_1 = arith.constant 0 : i32
    return %c0_i32, %c0_i32_0 : i32, i32
  }
  func.func @transform_6(%arg0: i32) -> (i32, i32) {
    %c0_i32 = arith.constant 0 : i32
    %c0_i32_0 = arith.constant 0 : i32
    %c0_i32_1 = arith.constant 0 : i32
    return %c0_i32, %c0_i32_0 : i32, i32
  }
  func.func @transform_7(%arg0: i32) -> (i32, i32) {
    %c0_i32 = arith.constant 0 : i32
    %c0_i32_0 = arith.constant 0 : i32
    return %arg0, %c0_i32 : i32, i32
  }
}

</mosaic_0001>

<llo_original>
// kernel: tpu_custom_call.1
$region0: #{tpu_custom_call.1}
  #allocation0 [shape = 'u32[]', space=smem, size = 0x4, offset = 0x4, fixed_abs, tag = 'smem constant byte address 0x4 - core index']
  #allocation1 [shape = 'u32[144,128]{1,0:T(1,128)}', space=vmem, size = 0x12000, scoped, tag = 'internal scratch']
  #allocation2 [shape = 'f32[2,32]{1,0:T(2,128)}', space=vmem, size = 0x400, scoped, tag = 'scratch operand']
  #allocation3 [shape = 'f32[16,96]{1,0:T(8,128)}', space=vmem, size = 0x2000, scoped, tag = 'scratch operand']
  #allocation4 [shape = 'f32[16,32]{1,0:T(8,128)}', space=vmem, size = 0x2000, scoped, tag = 'scratch operand']
  %s0 = inlined_call_operand.hbm [shape: f32[16,16], index: 0, kind: input, shape index: {}]
  %s1 = inlined_call_operand.hbm [shape: f32[16,96], index: 1, kind: input, shape index: {}]
  %s2 = inlined_call_operand.vmem [shape: f32[32,96], index: 2, kind: input, shape index: {}]
  %s3 = inlined_call_operand.vmem [shape: f32[1,96], index: 3, kind: input, shape index: {}]
  %s4 = inlined_call_operand.vmem [shape: f32[1,96], index: 4, kind: input, shape index: {}]
  %s5 = inlined_call_operand.vmem [shape: f32[32,8], index: 5, kind: input, shape index: {}]
  %s6 = inlined_call_operand.vmem [shape: f32[1,8], index: 6, kind: input, shape index: {}]
  %s7 = inlined_call_operand.vmem [shape: f32[16,8], index: 7, kind: output, shape index: {}]
  %s8 = sld [smem:[#allocation0]]
  $region50: #{tpu_custom_call.1} parent=0
    _
  %s10 = ssub.s32 1, %s8
  %s11 = scalar_select 0, %s10, %s8
  $region1: #{tpu_custom_call.1} parent=0
    #allocation5 [shape = 'u8[8192]{0}', space=vmem, size = 0x2000, scoped, tag = 'input window, operand 0, single buffered']
    #allocation6 [shape = 's32[1]{0}', space=sflag, size = 0x4, scoped, tag = 'scoped memory for tpu_custom_call.1']
    #allocation7 [shape = 'u8[8192]{0}', space=vmem, size = 0x2000, scoped, tag = 'input window, operand 1, single buffered']
    #allocation8 [shape = 's32[1]{0}', space=sflag, size = 0x4, scoped, tag = 'scoped memory for tpu_custom_call.1']
    %12 = vsyncpa [#allocation6], 0
    %13 = vsyncpa [#allocation8], 0
    // Predicated region
    $region2: #{tpu_custom_call.1} parent=1 // pred_check
      _
    $region3: #{tpu_custom_call.1} parent=1 // pred_check_branch
      %15 = sbr.rel (0) target = $region5
    $region4: #{tpu_custom_call.1} parent=1 // pred_region
      %s17 = ssub.s32 256, 256
      %18 = vsyncadd [#allocation6], %s17
      %s19 = sshll.u32 [#allocation5], 4
      %s20 = int_to_ptr.vmem [resolvable:$true] %s19
      %25 = dma.hbm_to_vmem [thread:$0]  %s0, 256, %s20, [#allocation6], 128, 128, 8
    $region5: #{tpu_custom_call.1} parent=1 // pred_fallthru
      _
    // Predicated region
    $region6: #{tpu_custom_call.1} parent=1 // pred_check
      _
    $region7: #{tpu_custom_call.1} parent=1 // pred_check_branch
      %27 = sbr.rel (0) target = $region9
    $region8: #{tpu_custom_call.1} parent=1 // pred_region
      %s29 = ssub.s32 256, 256
      %30 = vsyncadd [#allocation8], %s29
      %s31 = sshll.u32 [#allocation7], 4
      %s32 = int_to_ptr.vmem [resolvable:$true] %s31
      %37 = dma.hbm_to_vmem [thread:$0]  %s1, 256, %s32, [#allocation8], 128, 128, 8
    $region9: #{tpu_custom_call.1} parent=1 // pred_fallthru
      _
    // Predicated region
    $region10: #{tpu_custom_call.1} parent=1 // pred_check
      _
    $region11: #{tpu_custom_call.1} parent=1 // pred_check_branch
      %39 = sbr.rel (0) target = $region13
    $region12: #{tpu_custom_call.1} parent=1 // pred_region
      _
    $region13: #{tpu_custom_call.1} parent=1 // pred_fallthru
      _
    // Predicated region
    $region14: #{tpu_custom_call.1} parent=1 // pred_check
      _
    $region15: #{tpu_custom_call.1} parent=1 // pred_check_branch
      %41 = sbr.rel (0) target = $region17
    $region16: #{tpu_custom_call.1} parent=1 // pred_region
      _
    $region17: #{tpu_custom_call.1} parent=1 // pred_fallthru
      _
    // Predicated region
    $region18: #{tpu_custom_call.1} parent=1 // pred_check
      _
    $region19: #{tpu_custom_call.1} parent=1 // pred_check_branch
      %43 = sbr.rel (0) target = $region21
    $region20: #{tpu_custom_call.1} parent=1 // pred_region
      _
    $region21: #{tpu_custom_call.1} parent=1 // pred_fallthru
      _
    // Predicated region
    $region22: #{tpu_custom_call.1} parent=1 // pred_check
      _
    $region23: #{tpu_custom_call.1} parent=1 // pred_check_branch
      %45 = sbr.rel (0) target = $region25
    $region24: #{tpu_custom_call.1} parent=1 // pred_region
      _
    $region25: #{tpu_custom_call.1} parent=1 // pred_fallthru
      _
    // Predicated region
    $region26: #{tpu_custom_call.1} parent=1 // pred_check
      _
    $region27: #{tpu_custom_call.1} parent=1 // pred_check_branch
      %47 = sbr.rel (0) target = $region29
    $region28: #{tpu_custom_call.1} parent=1 // pred_region
      _
    $region29: #{tpu_custom_call.1} parent=1 // pred_fallthru
      _
    // Predicated region
    $region30: #{tpu_custom_call.1} parent=1 // pred_check
      _
    $region31: #{tpu_custom_call.1} parent=1 // pred_check_branch
      %49 = sbr.rel (0) target = $region33
    $region32: #{tpu_custom_call.1} parent=1 // pred_region
      %50 = dma.done [#allocation6], 256
    $region33: #{tpu_custom_call.1} parent=1 // pred_fallthru
      _
    // Predicated region
    $region34: #{tpu_custom_call.1} parent=1 // pred_check
      _
    $region35: #{tpu_custom_call.1} parent=1 // pred_check_branch
      %52 = sbr.rel (0) target = $region37
    $region36: #{tpu_custom_call.1} parent=1 // pred_region
      %53 = dma.done [#allocation8], 256
    $region37: #{tpu_custom_call.1} parent=1 // pred_fallthru
      _
    %p54 = scmp.eq.s32.totalorder 0, 0
    // Predicated region
    $region38: #{tpu_custom_call.1} parent=1 // pred_check
      %p55 = pneg %p54
    $region39: #{tpu_custom_call.1} parent=1 // pred_check_branch
      %57 = sbr.rel (%p55) target = $region41
    $region40: #{tpu_custom_call.1} parent=1 // pred_region
      %vm58 = vcmask 254976
      %59 = vst.msk [vmem:[#allocation2] sm:$0x3] %vm58, 0.0
    $region41: #{tpu_custom_call.1} parent=1 // pred_fallthru
      _
    %v60 = vld [vmem:[#allocation5] sm:$0xff]
    %v61 = vld [vmem:[#allocation5 + $0x8] sm:$0xff]
    %v62 = vld [vmem:[#allocation7] sm:$0xff]
    %v63 = vld [vmem:[#allocation7 + $0x8] sm:$0xff]
    %v64 = vld [vmem:[%s3] sm:$0x1]
    %v66 = vlaneseq
    %v67 = vshrl.u32 %v66, 7
    %v68 = vsub.s32 0, %v67
    %v69 = vrot.slane %v64, %v68
    %vm71 = vcmask 130048
    %v73 = vsel %vm71, %v60, 0
    %v76 = vsel %vm71, %v61, 0
    %78 = vmatprep.subr.mxu0 0.0
    %79 = vmatpush1.msra.mxu0 %v62
    %80 = vmatprep.subr.mxu0 0.0
    %81 = vmatpush1.msra.mxu0 %v63
    %82 = vmatprep.subr.mxu0 0.0
    %83 = vmatpush1.msra.mxu0 0.0
    %84 = vmatprep.subr.mxu0 0.0
    %85 = vmatpush1.msra.mxu0 0.0
    %86 = vmatprep.subr.mxu0 0.0
    %87 = vmatpush1.msra.mxu0 0.0
    %88 = vmatprep.subr.mxu0 0.0
    %89 = vmatpush1.msra.mxu0 0.0
    %90 = vmatprep.subr.mxu0 0.0
    %91 = vmatpush1.msra.mxu0 0.0
    %92 = vmatprep.subr.mxu0 0.0
    %93 = vmatpush1.msra.mxu0 0.0
    %94 = vmatprep.subr.mxu0 0.0
    %95 = vmatpush1.msra.mxu0 0.0
    %96 = vmatprep.subr.mxu0 0.0
    %97 = vmatpush1.msra.mxu0 0.0
    %98 = vmatprep.subr.mxu0 0.0
    %99 = vmatpush1.msra.mxu0 0.0
    %100 = vmatprep.subr.mxu0 0.0
    %101 = vmatpush1.msra.mxu0 0.0
    %102 = vmatprep.subr.mxu0 0.0
    %103 = vmatpush1.msra.mxu0 0.0
    %104 = vmatprep.subr.mxu0 0.0
    %105 = vmatpush1.msra.mxu0 0.0
    %106 = vmatprep.subr.mxu0 0.0
    %107 = vmatpush1.msra.mxu0 0.0
    %108 = vmatprep.subr.mxu0 0.0
    %109 = vmatpush1.msra.mxu0 0.0
    %110 = vmatprep.subr.mxu0 0.0
    %111 = vmatpush1.msra.mxu0 0.0
    %112 = vmatprep.subr.mxu0 0.0
    %113 = vmatpush1.msra.mxu0 0.0
    %114 = vmatprep.subr.mxu0 0.0
    %115 = vmatpush1.msra.mxu0 0.0
    %116 = vmatprep.subr.mxu0 0.0
    %117 = vmatpush1.msra.mxu0 0.0
    %118 = vmatprep.subr.mxu0 0.0
    %119 = vmatpush1.msra.mxu0 0.0
    %120 = vmatprep.subr.mxu0 0.0
    %121 = vmatpush1.msra.mxu0 0.0
    %122 = vmatprep.subr.mxu0 0.0
    %123 = vmatpush1.msra.mxu0 0.0
    %124 = vmatprep.subr.mxu0 0.0
    %125 = vmatpush1.msra.mxu0 0.0
    %126 = vmatprep.subr.mxu0 0.0
    %127 = vmatpush1.msra.mxu0 0.0
    %128 = vmatprep.subr.mxu0 0.0
    %129 = vmatpush1.msra.mxu0 0.0
    %130 = vmatprep.subr.mxu0 0.0
    %131 = vmatpush1.msra.mxu0 0.0
    %132 = vmatprep.subr.mxu0 0.0
    %133 = vmatpush1.msra.mxu0 0.0
    %134 = vmatprep.subr.mxu0 0.0
    %135 = vmatpush1.msra.mxu0 0.0
    %136 = vmatprep.subr.mxu0 0.0
    %137 = vmatpush1.msra.mxu0 0.0
    %138 = vmatprep.subr.mxu0 0.0
    %139 = vmatpush1.msra.mxu0 0.0
    %140 = vmatprep.subr.mxu0 0.0
    %141 = vmatpush1.msra.mxu0 0.0
    %142 = vmatprep.mubr.f32.mxu0 0.0
    %143 = vmatmul.mubr.f32.gmra.mrb[0].mxu0 %v73
    %v144 = vpop.f32.mrb[0].mxu0
    %v145 = vadd.f32 %v69, %v144
    %v146 = vpop.f32.mrb[0].mxu0
    %147 = vmatprep.mubr.f32.mxu0 0.0
    %148 = vmatmul.mubr.f32.gmra.mrb[0].mxu0 %v76
    %v149 = vpop.f32.mrb[0].mxu0
    %v150 = vadd.f32 %v69, %v149
    %v151 = vpop.f32.mrb[0].mxu0
    %152 = vdwg.mxu0
    %vm153 = vcmask 785408
    %154 = vst.msk [vmem:[#allocation3] sm:$0xff] %vm153, %v145
    %155 = vst.msk [vmem:[#allocation3 + $0x8] sm:$0xff] %vm153, %v150
    %v156 = vld [vmem:[#allocation2] sm:$0x3]
    %v157 = vld [vmem:[#allocation3] sm:$0x3]
    %v158 = vld [vmem:[%s2] sm:$0xff]
    %v159 = vld [vmem:[%s2 + $0x8] sm:$0xff]
    %v160 = vld [vmem:[%s2 + $0x10] sm:$0xff]
    %v161 = vld [vmem:[%s2 + $0x18] sm:$0xff]
    %v162 = vld [vmem:[%s4] sm:$0x1]
    %v164 = vlaneseq
    %v165 = vshrl.u32 %v164, 7
    %v166 = vsub.s32 0, %v165
    %v167 = vrot.slane %v162, %v166
    %vm169 = vcmask 261120
    %v171 = vsel %vm169, %v156, 0
    %173 = vmatprep.subr.mxu0 0.0
    %174 = vmatpush1.msra.mxu0 %v158
    %175 = vmatprep.subr.mxu0 0.0
    %176 = vmatpush1.msra.mxu0 %v159
    %177 = vmatprep.subr.mxu0 0.0
    %178 = vmatpush1.msra.mxu0 %v160
    %179 = vmatprep.subr.mxu0 0.0
    %180 = vmatpush1.msra.mxu0 %v161
    %181 = vmatprep.subr.mxu0 0.0
    %182 = vmatpush1.msra.mxu0 0.0
    %183 = vmatprep.subr.mxu0 0.0
    %184 = vmatpush1.msra.mxu0 0.0
    %185 = vmatprep.subr.mxu0 0.0
    %186 = vmatpush1.msra.mxu0 0.0
    %187 = vmatprep.subr.mxu0 0.0
    %188 = vmatpush1.msra.mxu0 0.0
    %189 = vmatprep.subr.mxu0 0.0
    %190 = vmatpush1.msra.mxu0 0.0
    %191 = vmatprep.subr.mxu0 0.0
    %192 = vmatpush1.msra.mxu0 0.0
    %193 = vmatprep.subr.mxu0 0.0
    %194 = vmatpush1.msra.mxu0 0.0
    %195 = vmatprep.subr.mxu0 0.0
    %196 = vmatpush1.msra.mxu0 0.0
    %197 = vmatprep.subr.mxu0 0.0
    %198 = vmatpush1.msra.mxu0 0.0
    %199 = vmatprep.subr.mxu0 0.0
    %200 = vmatpush1.msra.mxu0 0.0
    %201 = vmatprep.subr.mxu0 0.0
    %202 = vmatpush1.msra.mxu0 0.0
    %203 = vmatprep.subr.mxu0 0.0
    %204 = vmatpush1.msra.mxu0 0.0
    %205 = vmatprep.subr.mxu0 0.0
    %206 = vmatpush1.msra.mxu0 0.0
    %207 = vmatprep.subr.mxu0 0.0
    %208 = vmatpush1.msra.mxu0 0.0
    %209 = vmatprep.subr.mxu0 0.0
    %210 = vmatpush1.msra.mxu0 0.0
    %211 = vmatprep.subr.mxu0 0.0
    %212 = vmatpush1.msra.mxu0 0.0
    %213 = vmatprep.subr.mxu0 0.0
    %214 = vmatpush1.msra.mxu0 0.0
    %215 = vmatprep.subr.mxu0 0.0
    %216 = vmatpush1.msra.mxu0 0.0
    %217 = vmatprep.subr.mxu0 0.0
    %218 = vmatpush1.msra.mxu0 0.0
    %219 = vmatprep.subr.mxu0 0.0
    %220 = vmatpush1.msra.mxu0 0.0
    %221 = vmatprep.subr.mxu0 0.0
    %222 = vmatpush1.msra.mxu0 0.0
    %223 = vmatprep.subr.mxu0 0.0
    %224 = vmatpush1.msra.mxu0 0.0
    %225 = vmatprep.subr.mxu0 0.0
    %226 = vmatpush1.msra.mxu0 0.0
    %227 = vmatprep.subr.mxu0 0.0
    %228 = vmatpush1.msra.mxu0 0.0
    %229 = vmatprep.subr.mxu0 0.0
    %230 = vmatpush1.msra.mxu0 0.0
    %231 = vmatprep.subr.mxu0 0.0
    %232 = vmatpush1.msra.mxu0 0.0
    %233 = vmatprep.subr.mxu0 0.0
    %234 = vmatpush1.msra.mxu0 0.0
    %235 = vmatprep.subr.mxu0 0.0
    %236 = vmatpush1.msra.mxu0 0.0
    %237 = vmatprep.mubr.f32.mxu0 0.0
    %238 = vmatmul.mubr.f32.gmra.mrb[0].mxu0 %v171
    %v239 = vpop.f32.mrb[0].mxu0
    %v240 = vadd.f32 %v167, %v239
    %v241 = vpop.f32.mrb[0].mxu0
    %242 = vdwg.mxu0
    %v243 = vadd.f32 %v157, %v240
    %v244 = vxor.u32 %v243, 2147483648
    %v245 = vmul.f32 %v244, 1.442695
    %v246 = vpow.pop %v245
    %v247 = vadd.f32 %v246, 1.0
    %v248 = vrcp.pop %v247
    %v249 = vmul.f32 1.0, %v248
    %251 = vrot.lane.b32.xlu0 %v240, 64
    %v252 = vpop.permute.xlu0 %251
    %v254 = vmul.f32 %v249, %v252
    %256 = vrot.lane.b32.xlu0 %v254, 64
    %v257 = vpop.permute.xlu0 %256
    %v259 = vadd.f32 %v157, %v257
    %v260 = vtanh.pop %v259
    %v261 = vsub.f32 1.0, %v249
    %263 = vrot.lane.b32.xlu0 %v260, 96
    %v264 = vpop.permute.xlu0 %263
    %v266 = vmul.f32 %v261, %v264
    %267 = vrot.lane.b32.xlu0 %v156, 32
    %v268 = vpop.permute.xlu0 %267
    %v270 = vmul.f32 %v249, %v268
    %v271 = vadd.f32 %v266, %v270
    %273 = vrot.lane.b32.xlu0 %v271, 96
    %v274 = vpop.permute.xlu0 %273
    %vm276 = vcmask 254976
    %277 = vst.msk [vmem:[#allocation4] sm:$0x3] %vm276, %v274
    %s278 = scalar_lea.vmem [#allocation3], 2
    %v279 = vld [vmem:[%s278] sm:$0x3]
    %v280 = vld [vmem:[%s2] sm:$0xff]
    %v281 = vld [vmem:[%s2 + $0x8] sm:$0xff]
    %v282 = vld [vmem:[%s2 + $0x10] sm:$0xff]
    %v283 = vld [vmem:[%s2 + $0x18] sm:$0xff]
    %v284 = vld [vmem:[%s4] sm:$0x1]
    %v286 = vlaneseq
    %v287 = vshrl.u32 %v286, 7
    %v288 = vsub.s32 0, %v287
    %v289 = vrot.slane %v284, %v288
    %v291 = vsel %vm169, %v274, 0
    %293 = vmatprep.subr.mxu0 0.0
    %294 = vmatpush1.msra.mxu0 %v280
    %295 = vmatprep.subr.mxu0 0.0
    %296 = vmatpush1.msra.mxu0 %v281
    %297 = vmatprep.subr.mxu0 0.0
    %298 = vmatpush1.msra.mxu0 %v282
    %299 = vmatprep.subr.mxu0 0.0
    %300 = vmatpush1.msra.mxu0 %v283
    %301 = vmatprep.subr.mxu0 0.0
    %302 = vmatpush1.msra.mxu0 0.0
    %303 = vmatprep.subr.mxu0 0.0
    %304 = vmatpush1.msra.mxu0 0.0
    %305 = vmatprep.subr.mxu0 0.0
    %306 = vmatpush1.msra.mxu0 0.0
    %307 = vmatprep.subr.mxu0 0.0
    %308 = vmatpush1.msra.mxu0 0.0
    %309 = vmatprep.subr.mxu0 0.0
    %310 = vmatpush1.msra.mxu0 0.0
    %311 = vmatprep.subr.mxu0 0.0
    %312 = vmatpush1.msra.mxu0 0.0
    %313 = vmatprep.subr.mxu0 0.0
    %314 = vmatpush1.msra.mxu0 0.0
    %315 = vmatprep.subr.mxu0 0.0
    %316 = vmatpush1.msra.mxu0 0.0
    %317 = vmatprep.subr.mxu0 0.0
    %318 = vmatpush1.msra.mxu0 0.0
    %319 = vmatprep.subr.mxu0 0.0
    %320 = vmatpush1.msra.mxu0 0.0
    %321 = vmatprep.subr.mxu0 0.0
    %322 = vmatpush1.msra.mxu0 0.0
    %323 = vmatprep.subr.mxu0 0.0
    %324 = vmatpush1.msra.mxu0 0.0
    %325 = vmatprep.subr.mxu0 0.0
    %326 = vmatpush1.msra.mxu0 0.0
    %327 = vmatprep.subr.mxu0 0.0
    %328 = vmatpush1.msra.mxu0 0.0
    %329 = vmatprep.subr.mxu0 0.0
    %330 = vmatpush1.msra.mxu0 0.0
    %331 = vmatprep.subr.mxu0 0.0
    %332 = vmatpush1.msra.mxu0 0.0
    %333 = vmatprep.subr.mxu0 0.0
    %334 = vmatpush1.msra.mxu0 0.0
    %335 = vmatprep.subr.mxu0 0.0
    %336 = vmatpush1.msra.mxu0 0.0
    %337 = vmatprep.subr.mxu0 0.0
    %338 = vmatpush1.msra.mxu0 0.0
    %339 = vmatprep.subr.mxu0 0.0
    %340 = vmatpush1.msra.mxu0 0.0
    %341 = vmatprep.subr.mxu0 0.0
    %342 = vmatpush1.msra.mxu0 0.0
    %343 = vmatprep.subr.mxu0 0.0
    %344 = vmatpush1.msra.mxu0 0.0
    %345 = vmatprep.subr.mxu0 0.0
    %346 = vmatpush1.msra.mxu0 0.0
    %347 = vmatprep.subr.mxu0 0.0
    %348 = vmatpush1.msra.mxu0 0.0
    %349 = vmatprep.subr.mxu0 0.0
    %350 = vmatpush1.msra.mxu0 0.0
    %351 = vmatprep.subr.mxu0 0.0
    %352 = vmatpush1.msra.mxu0 0.0
    %353 = vmatprep.subr.mxu0 0.0
    %354 = vmatpush1.msra.mxu0 0.0
    %355 = vmatprep.subr.mxu0 0.0
    %356 = vmatpush1.msra.mxu0 0.0
    %357 = vmatprep.mubr.f32.mxu0 0.0
    %358 = vmatmul.mubr.f32.gmra.mrb[0].mxu0 %v291
    %v359 = vpop.f32.mrb[0].mxu0
    %v360 = vadd.f32 %v289, %v359
    %v361 = vpop.f32.mrb[0].mxu0
    %362 = vdwg.mxu0
    %v363 = vadd.f32 %v279, %v360
    %v364 = vxor.u32 %v363, 2147483648
    %v365 = vmul.f32 %v364, 1.442695
    %v366 = vpow.pop %v365
    %v367 = vadd.f32 %v366, 1.0
    %v368 = vrcp.pop %v367
    %v369 = vmul.f32 1.0, %v368
    %371 = vrot.lane.b32.xlu0 %v360, 64
    %v372 = vpop.permute.xlu0 %371
    %v374 = vmul.f32 %v369, %v372
    %376 = vrot.lane.b32.xlu0 %v374, 64
    %v377 = vpop.permute.xlu0 %376
    %v379 = vadd.f32 %v279, %v377
    %v380 = vtanh.pop %v379
    %v381 = vsub.f32 1.0, %v369
    %383 = vrot.lane.b32.xlu0 %v380, 96
    %v384 = vpop.permute.xlu0 %383
    %v386 = vmul.f32 %v381, %v384
    %v387 = vmul.f32 %v369, %v271
    %v388 = vadd.f32 %v386, %v387
    %390 = vrot.lane.b32.xlu0 %v388, 96
    %v391 = vpop.permute.xlu0 %390
    %s393 = scalar_lea.vmem [#allocation4], 2
    %394 = vst.msk [vmem:[%s393] sm:$0x3] %vm276, %v391
    %s395 = scalar_lea.vmem [#allocation3], 4
    %v396 = vld [vmem:[%s395] sm:$0x3]
    %v397 = vld [vmem:[%s2] sm:$0xff]
    %v398 = vld [vmem:[%s2 + $0x8] sm:$0xff]
    %v399 = vld [vmem:[%s2 + $0x10] sm:$0xff]
    %v400 = vld [vmem:[%s2 + $0x18] sm:$0xff]
    %v401 = vld [vmem:[%s4] sm:$0x1]
    %v403 = vlaneseq
    %v404 = vshrl.u32 %v403, 7
    %v405 = vsub.s32 0, %v404
    %v406 = vrot.slane %v401, %v405
    %v408 = vsel %vm169, %v391, 0
    %410 = vmatprep.subr.mxu0 0.0
    %411 = vmatpush1.msra.mxu0 %v397
    %412 = vmatprep.subr.mxu0 0.0
    %413 = vmatpush1.msra.mxu0 %v398
    %414 = vmatprep.subr.mxu0 0.0
    %415 = vmatpush1.msra.mxu0 %v399
    %416 = vmatprep.subr.mxu0 0.0
    %417 = vmatpush1.msra.mxu0 %v400
    %418 = vmatprep.subr.mxu0 0.0
    %419 = vmatpush1.msra.mxu0 0.0
    %420 = vmatprep.subr.mxu0 0.0
    %421 = vmatpush1.msra.mxu0 0.0
    %422 = vmatprep.subr.mxu0 0.0
    %423 = vmatpush1.msra.mxu0 0.0
    %424 = vmatprep.subr.mxu0 0.0
    %425 = vmatpush1.msra.mxu0 0.0
    %426 = vmatprep.subr.mxu0 0.0
    %427 = vmatpush1.msra.mxu0 0.0
    %428 = vmatprep.subr.mxu0 0.0
    %429 = vmatpush1.msra.mxu0 0.0
    %430 = vmatprep.subr.mxu0 0.0
    %431 = vmatpush1.msra.mxu0 0.0
    %432 = vmatprep.subr.mxu0 0.0
    %433 = vmatpush1.msra.mxu0 0.0
    %434 = vmatprep.subr.mxu0 0.0
    %435 = vmatpush1.msra.mxu0 0.0
    %436 = vmatprep.subr.mxu0 0.0
    %437 = vmatpush1.msra.mxu0 0.0
    %438 = vmatprep.subr.mxu0 0.0
    %439 = vmatpush1.msra.mxu0 0.0
    %440 = vmatprep.subr.mxu0 0.0
    %441 = vmatpush1.msra.mxu0 0.0
    %442 = vmatprep.subr.mxu0 0.0
    %443 = vmatpush1.msra.mxu0 0.0
    %444 = vmatprep.subr.mxu0 0.0
    %445 = vmatpush1.msra.mxu0 0.0
    %446 = vmatprep.subr.mxu0 0.0
    %447 = vmatpush1.msra.mxu0 0.0
    %448 = vmatprep.subr.mxu0 0.0
    %449 = vmatpush1.msra.mxu0 0.0
    %450 = vmatprep.subr.mxu0 0.0
    %451 = vmatpush1.msra.mxu0 0.0
    %452 = vmatprep.subr.mxu0 0.0
    %453 = vmatpush1.msra.mxu0 0.0
    %454 = vmatprep.subr.mxu0 0.0
    %455 = vmatpush1.msra.mxu0 0.0
    %456 = vmatprep.subr.mxu0 0.0
    %457 = vmatpush1.msra.mxu0 0.0
    %458 = vmatprep.subr.mxu0 0.0
    %459 = vmatpush1.msra.mxu0 0.0
    %460 = vmatprep.subr.mxu0 0.0
    %461 = vmatpush1.msra.mxu0 0.0
    %462 = vmatprep.subr.mxu0 0.0
    %463 = vmatpush1.msra.mxu0 0.0
    %464 = vmatprep.subr.mxu0 0.0
    %465 = vmatpush1.msra.mxu0 0.0
    %466 = vmatprep.subr.mxu0 0.0
    %467 = vmatpush1.msra.mxu0 0.0
    %468 = vmatprep.subr.mxu0 0.0
    %469 = vmatpush1.msra.mxu0 0.0
    %470 = vmatprep.subr.mxu0 0.0
    %471 = vmatpush1.msra.mxu0 0.0
    %472 = vmatprep.subr.mxu0 0.0
    %473 = vmatpush1.msra.mxu0 0.0
    %474 = vmatprep.mubr.f32.mxu0 0.0
    %475 = vmatmul.mubr.f32.gmra.mrb[0].mxu0 %v408
    %v476 = vpop.f32.mrb[0].mxu0
    %v477 = vadd.f32 %v406, %v476
    %v478 = vpop.f32.mrb[0].mxu0
    %479 = vdwg.mxu0
    %v480 = vadd.f32 %v396, %v477
    %v481 = vxor.u32 %v480, 2147483648
    %v482 = vmul.f32 %v481, 1.442695
    %v483 = vpow.pop %v482
    %v484 = vadd.f32 %v483, 1.0
    %v485 = vrcp.pop %v484
    %v486 = vmul.f32 1.0, %v485
    %488 = vrot.lane.b32.xlu0 %v477, 64
    %v489 = vpop.permute.xlu0 %488
    %v491 = vmul.f32 %v486, %v489
    %493 = vrot.lane.b32.xlu0 %v491, 64
    %v494 = vpop.permute.xlu0 %493
    %v496 = vadd.f32 %v396, %v494
    %v497 = vtanh.pop %v496
    %v498 = vsub.f32 1.0, %v486
    %500 = vrot.lane.b32.xlu0 %v497, 96
    %v501 = vpop.permute.xlu0 %500
    %v503 = vmul.f32 %v498, %v501
    %v504 = vmul.f32 %v486, %v388
    %v505 = vadd.f32 %v503, %v504
    %507 = vrot.lane.b32.xlu0 %v505, 96
    %v508 = vpop.permute.xlu0 %507
    %s510 = scalar_lea.vmem [#allocation4], 4
    %511 = vst.msk [vmem:[%s510] sm:$0x3] %vm276, %v508
    %s512 = scalar_lea.vmem [#allocation3], 6
    %v513 = vld [vmem:[%s512] sm:$0x3]
    %v514 = vld [vmem:[%s2] sm:$0xff]
    %v515 = vld [vmem:[%s2 + $0x8] sm:$0xff]
    %v516 = vld [vmem:[%s2 + $0x10] sm:$0xff]
    %v517 = vld [vmem:[%s2 + $0x18] sm:$0xff]
    %v518 = vld [vmem:[%s4] sm:$0x1]
    %v520 = vlaneseq
    %v521 = vshrl.u32 %v520, 7
    %v522 = vsub.s32 0, %v521
    %v523 = vrot.slane %v518, %v522
    %v525 = vsel %vm169, %v508, 0
    %527 = vmatprep.subr.mxu0 0.0
    %528 = vmatpush1.msra.mxu0 %v514
    %529 = vmatprep.subr.mxu0 0.0
    %530 = vmatpush1.msra.mxu0 %v515
    %531 = vmatprep.subr.mxu0 0.0
    %532 = vmatpush1.msra.mxu0 %v516
    %533 = vmatprep.subr.mxu0 0.0
    %534 = vmatpush1.msra.mxu0 %v517
    %535 = vmatprep.subr.mxu0 0.0
    %536 = vmatpush1.msra.mxu0 0.0
    %537 = vmatprep.subr.mxu0 0.0
    %538 = vmatpush1.msra.mxu0 0.0
    %539 = vmatprep.subr.mxu0 0.0
    %540 = vmatpush1.msra.mxu0 0.0
    %541 = vmatprep.subr.mxu0 0.0
    %542 = vmatpush1.msra.mxu0 0.0
    %543 = vmatprep.subr.mxu0 0.0
    %544 = vmatpush1.msra.mxu0 0.0
    %545 = vmatprep.subr.mxu0 0.0
    %546 = vmatpush1.msra.mxu0 0.0
    %547 = vmatprep.subr.mxu0 0.0
    %548 = vmatpush1.msra.mxu0 0.0
    %549 = vmatprep.subr.mxu0 0.0
    %550 = vmatpush1.msra.mxu0 0.0
    %551 = vmatprep.subr.mxu0 0.0
    %552 = vmatpush1.msra.mxu0 0.0
    %553 = vmatprep.subr.mxu0 0.0
    %554 = vmatpush1.msra.mxu0 0.0
    %555 = vmatprep.subr.mxu0 0.0
    %556 = vmatpush1.msra.mxu0 0.0
    %557 = vmatprep.subr.mxu0 0.0
    %558 = vmatpush1.msra.mxu0 0.0
    %559 = vmatprep.subr.mxu0 0.0
    %560 = vmatpush1.msra.mxu0 0.0
    %561 = vmatprep.subr.mxu0 0.0
    %562 = vmatpush1.msra.mxu0 0.0
    %563 = vmatprep.subr.mxu0 0.0
    %564 = vmatpush1.msra.mxu0 0.0
    %565 = vmatprep.subr.mxu0 0.0
    %566 = vmatpush1.msra.mxu0 0.0
    %567 = vmatprep.subr.mxu0 0.0
    %568 = vmatpush1.msra.mxu0 0.0
    %569 = vmatprep.subr.mxu0 0.0
    %570 = vmatpush1.msra.mxu0 0.0
    %571 = vmatprep.subr.mxu0 0.0
    %572 = vmatpush1.msra.mxu0 0.0
    %573 = vmatprep.subr.mxu0 0.0
    %574 = vmatpush1.msra.mxu0 0.0
    %575 = vmatprep.subr.mxu0 0.0
    %576 = vmatpush1.msra.mxu0 0.0
    %577 = vmatprep.subr.mxu0 0.0
    %578 = vmatpush1.msra.mxu0 0.0
    %579 = vmatprep.subr.mxu0 0.0
    %580 = vmatpush1.msra.mxu0 0.0
    %581 = vmatprep.subr.mxu0 0.0
    %582 = vmatpush1.msra.mxu0 0.0
    %583 = vmatprep.subr.mxu0 0.0
    %584 = vmatpush1.msra.mxu0 0.0
    %585 = vmatprep.subr.mxu0 0.0
    %586 = vmatpush1.msra.mxu0 0.0
    %587 = vmatprep.subr.mxu0 0.0
    %588 = vmatpush1.msra.mxu0 0.0
    %589 = vmatprep.subr.mxu0 0.0
    %590 = vmatpush1.msra.mxu0 0.0
    %591 = vmatprep.mubr.f32.mxu0 0.0
    %592 = vmatmul.mubr.f32.gmra.mrb[0].mxu0 %v525
    %v593 = vpop.f32.mrb[0].mxu0
    %v594 = vadd.f32 %v523, %v593
    %v595 = vpop.f32.mrb[0].mxu0
    %596 = vdwg.mxu0
    %v597 = vadd.f32 %v513, %v594
    %v598 = vxor.u32 %v597, 2147483648
    %v599 = vmul.f32 %v598, 1.442695
    %v600 = vpow.pop %v599
    %v601 = vadd.f32 %v600, 1.0
    %v602 = vrcp.pop %v601
    %v603 = vmul.f32 1.0, %v602
    %605 = vrot.lane.b32.xlu0 %v594, 64
    %v606 = vpop.permute.xlu0 %605
    %v608 = vmul.f32 %v603, %v606
    %610 = vrot.lane.b32.xlu0 %v608, 64
    %v611 = vpop.permute.xlu0 %610
    %v613 = vadd.f32 %v513, %v611
    %v614 = vtanh.pop %v613
    %v615 = vsub.f32 1.0, %v603
    %617 = vrot.lane.b32.xlu0 %v614, 96
    %v618 = vpop.permute.xlu0 %617
    %v620 = vmul.f32 %v615, %v618
    %v621 = vmul.f32 %v603, %v505
    %v622 = vadd.f32 %v620, %v621
    %624 = vrot.lane.b32.xlu0 %v622, 96
    %v625 = vpop.permute.xlu0 %624
    %s627 = scalar_lea.vmem [#allocation4], 6
    %628 = vst.msk [vmem:[%s627] sm:$0x3] %vm276, %v625
    %s629 = scalar_lea.vmem [#allocation3], 8
    %v630 = vld [vmem:[%s629] sm:$0x3]
    %v631 = vld [vmem:[%s2] sm:$0xff]
    %v632 = vld [vmem:[%s2 + $0x8] sm:$0xff]
    %v633 = vld [vmem:[%s2 + $0x10] sm:$0xff]
    %v634 = vld [vmem:[%s2 + $0x18] sm:$0xff]
    %v635 = vld [vmem:[%s4] sm:$0x1]
    %v637 = vlaneseq
    %v638 = vshrl.u32 %v637, 7
    %v639 = vsub.s32 0, %v638
    %v640 = vrot.slane %v635, %v639
    %v642 = vsel %vm169, %v625, 0
    %644 = vmatprep.subr.mxu0 0.0
    %645 = vmatpush1.msra.mxu0 %v631
    %646 = vmatprep.subr.mxu0 0.0
    %647 = vmatpush1.msra.mxu0 %v632
    %648 = vmatprep.subr.mxu0 0.0
    %649 = vmatpush1.msra.mxu0 %v633
    %650 = vmatprep.subr.mxu0 0.0
    %651 = vmatpush1.msra.mxu0 %v634
    %652 = vmatprep.subr.mxu0 0.0
    %653 = vmatpush1.msra.mxu0 0.0
    %654 = vmatprep.subr.mxu0 0.0
    %655 = vmatpush1.msra.mxu0 0.0
    %656 = vmatprep.subr.mxu0 0.0
    %657 = vmatpush1.msra.mxu0 0.0
    %658 = vmatprep.subr.mxu0 0.0
    %659 = vmatpush1.msra.mxu0 0.0
    %660 = vmatprep.subr.mxu0 0.0
    %661 = vmatpush1.msra.mxu0 0.0
    %662 = vmatprep.subr.mxu0 0.0
    %663 = vmatpush1.msra.mxu0 0.0
    %664 = vmatprep.subr.mxu0 0.0
    %665 = vmatpush1.msra.mxu0 0.0
    %666 = vmatprep.subr.mxu0 0.0
    %667 = vmatpush1.msra.mxu0 0.0
    %668 = vmatprep.subr.mxu0 0.0
    %669 = vmatpush1.msra.mxu0 0.0
    %670 = vmatprep.subr.mxu0 0.0
    %671 = vmatpush1.msra.mxu0 0.0
    %672 = vmatprep.subr.mxu0 0.0
    %673 = vmatpush1.msra.mxu0 0.0
    %674 = vmatprep.subr.mxu0 0.0
    %675 = vmatpush1.msra.mxu0 0.0
    %676 = vmatprep.subr.mxu0 0.0
    %677 = vmatpush1.msra.mxu0 0.0
    %678 = vmatprep.subr.mxu0 0.0
    %679 = vmatpush1.msra.mxu0 0.0
    %680 = vmatprep.subr.mxu0 0.0
    %681 = vmatpush1.msra.mxu0 0.0
    %682 = vmatprep.subr.mxu0 0.0
    %683 = vmatpush1.msra.mxu0 0.0
    %684 = vmatprep.subr.mxu0 0.0
    %685 = vmatpush1.msra.mxu0 0.0
    %686 = vmatprep.subr.mxu0 0.0
    %687 = vmatpush1.msra.mxu0 0.0
    %688 = vmatprep.subr.mxu0 0.0
    %689 = vmatpush1.msra.mxu0 0.0
    %690 = vmatprep.subr.mxu0 0.0
    %691 = vmatpush1.msra.mxu0 0.0
    %692 = vmatprep.subr.mxu0 0.0
    %693 = vmatpush1.msra.mxu0 0.0
    %694 = vmatprep.subr.mxu0 0.0
    %695 = vmatpush1.msra.mxu0 0.0
    %696 = vmatprep.subr.mxu0 0.0
    %697 = vmatpush1.msra.mxu0 0.0
    %698 = vmatprep.subr.mxu0 0.0
    %699 = vmatpush1.msra.mxu0 0.0
    %700 = vmatprep.subr.mxu0 0.0
    %701 = vmatpush1.msra.mxu0 0.0
    %702 = vmatprep.subr.mxu0 0.0
    %703 = vmatpush1.msra.mxu0 0.0
    %704 = vmatprep.subr.mxu0 0.0
    %705 = vmatpush1.msra.mxu0 0.0
    %706 = vmatprep.subr.mxu0 0.0
    %707 = vmatpush1.msra.mxu0 0.0
    %708 = vmatprep.mubr.f32.mxu0 0.0
    %709 = vmatmul.mubr.f32.gmra.mrb[0].mxu0 %v642
    %v710 = vpop.f32.mrb[0].mxu0
    %v711 = vadd.f32 %v640, %v710
    %v712 = vpop.f32.mrb[0].mxu0
    %713 = vdwg.mxu0
    %v714 = vadd.f32 %v630, %v711
    %v715 = vxor.u32 %v714, 2147483648
    %v716 = vmul.f32 %v715, 1.442695
    %v717 = vpow.pop %v716
    %v718 = vadd.f32 %v717, 1.0
    %v719 = vrcp.pop %v718
    %v720 = vmul.f32 1.0, %v719
    %722 = vrot.lane.b32.xlu0 %v711, 64
    %v723 = vpop.permute.xlu0 %722
    %v725 = vmul.f32 %v720, %v723
    %727 = vrot.lane.b32.xlu0 %v725, 64
    %v728 = vpop.permute.xlu0 %727
    %v730 = vadd.f32 %v630, %v728
    %v731 = vtanh.pop %v730
    %v732 = vsub.f32 1.0, %v720
    %734 = vrot.lane.b32.xlu0 %v731, 96
    %v735 = vpop.permute.xlu0 %734
    %v737 = vmul.f32 %v732, %v735
    %v738 = vmul.f32 %v720, %v622
    %v739 = vadd.f32 %v737, %v738
    %741 = vrot.lane.b32.xlu0 %v739, 96
    %v742 = vpop.permute.xlu0 %741
    %s744 = scalar_lea.vmem [#allocation4], 8
    %745 = vst.msk [vmem:[%s744] sm:$0x3] %vm276, %v742
    %s746 = scalar_lea.vmem [#allocation3], 10
    %v747 = vld [vmem:[%s746] sm:$0x3]
    %v748 = vld [vmem:[%s2] sm:$0xff]
    %v749 = vld [vmem:[%s2 + $0x8] sm:$0xff]
    %v750 = vld [vmem:[%s2 + $0x10] sm:$0xff]
    %v751 = vld [vmem:[%s2 + $0x18] sm:$0xff]
    %v752 = vld [vmem:[%s4] sm:$0x1]
    %v754 = vlaneseq
    %v755 = vshrl.u32 %v754, 7
    %v756 = vsub.s32 0, %v755
    %v757 = vrot.slane %v752, %v756
    %v759 = vsel %vm169, %v742, 0
    %761 = vmatprep.subr.mxu0 0.0
    %762 = vmatpush1.msra.mxu0 %v748
    %763 = vmatprep.subr.mxu0 0.0
    %764 = vmatpush1.msra.mxu0 %v749
    %765 = vmatprep.subr.mxu0 0.0
    %766 = vmatpush1.msra.mxu0 %v750
    %767 = vmatprep.subr.mxu0 0.0
    %768 = vmatpush1.msra.mxu0 %v751
    %769 = vmatprep.subr.mxu0 0.0
    %770 = vmatpush1.msra.mxu0 0.0
    %771 = vmatprep.subr.mxu0 0.0
    %772 = vmatpush1.msra.mxu0 0.0
    %773 = vmatprep.subr.mxu0 0.0
    %774 = vmatpush1.msra.mxu0 0.0
    %775 = vmatprep.subr.mxu0 0.0
    %776 = vmatpush1.msra.mxu0 0.0
    %777 = vmatprep.subr.mxu0 0.0
    %778 = vmatpush1.msra.mxu0 0.0
    %779 = vmatprep.subr.mxu0 0.0
    %780 = vmatpush1.msra.mxu0 0.0
    %781 = vmatprep.subr.mxu0 0.0
    %782 = vmatpush1.msra.mxu0 0.0
    %783 = vmatprep.subr.mxu0 0.0
    %784 = vmatpush1.msra.mxu0 0.0
    %785 = vmatprep.subr.mxu0 0.0
    %786 = vmatpush1.msra.mxu0 0.0
    %787 = vmatprep.subr.mxu0 0.0
    %788 = vmatpush1.msra.mxu0 0.0
    %789 = vmatprep.subr.mxu0 0.0
    %790 = vmatpush1.msra.mxu0 0.0
    %791 = vmatprep.subr.mxu0 0.0
    %792 = vmatpush1.msra.mxu0 0.0
    %793 = vmatprep.subr.mxu0 0.0
    %794 = vmatpush1.msra.mxu0 0.0
    %795 = vmatprep.subr.mxu0 0.0
    %796 = vmatpush1.msra.mxu0 0.0
    %797 = vmatprep.subr.mxu0 0.0
    %798 = vmatpush1.msra.mxu0 0.0
    %799 = vmatprep.subr.mxu0 0.0
    %800 = vmatpush1.msra.mxu0 0.0
    %801 = vmatprep.subr.mxu0 0.0
    %802 = vmatpush1.msra.mxu0 0.0
    %803 = vmatprep.subr.mxu0 0.0
    %804 = vmatpush1.msra.mxu0 0.0
    %805 = vmatprep.subr.mxu0 0.0
    %806 = vmatpush1.msra.mxu0 0.0
    %807 = vmatprep.subr.mxu0 0.0
    %808 = vmatpush1.msra.mxu0 0.0
    %809 = vmatprep.subr.mxu0 0.0
    %810 = vmatpush1.msra.mxu0 0.0
    %811 = vmatprep.subr.mxu0 0.0
    %812 = vmatpush1.msra.mxu0 0.0
    %813 = vmatprep.subr.mxu0 0.0
    %814 = vmatpush1.msra.mxu0 0.0
    %815 = vmatprep.subr.mxu0 0.0
    %816 = vmatpush1.msra.mxu0 0.0
    %817 = vmatprep.subr.mxu0 0.0
    %818 = vmatpush1.msra.mxu0 0.0
    %819 = vmatprep.subr.mxu0 0.0
    %820 = vmatpush1.msra.mxu0 0.0
    %821 = vmatprep.subr.mxu0 0.0
    %822 = vmatpush1.msra.mxu0 0.0
    %823 = vmatprep.subr.mxu0 0.0
    %824 = vmatpush1.msra.mxu0 0.0
    %825 = vmatprep.mubr.f32.mxu0 0.0
    %826 = vmatmul.mubr.f32.gmra.mrb[0].mxu0 %v759
    %v827 = vpop.f32.mrb[0].mxu0
    %v828 = vadd.f32 %v757, %v827
    %v829 = vpop.f32.mrb[0].mxu0
    %830 = vdwg.mxu0
    %v831 = vadd.f32 %v747, %v828
    %v832 = vxor.u32 %v831, 2147483648
    %v833 = vmul.f32 %v832, 1.442695
    %v834 = vpow.pop %v833
    %v835 = vadd.f32 %v834, 1.0
    %v836 = vrcp.pop %v835
    %v837 = vmul.f32 1.0, %v836
    %839 = vrot.lane.b32.xlu0 %v828, 64
    %v840 = vpop.permute.xlu0 %839
    %v842 = vmul.f32 %v837, %v840
    %844 = vrot.lane.b32.xlu0 %v842, 64
    %v845 = vpop.permute.xlu0 %844
    %v847 = vadd.f32 %v747, %v845
    %v848 = vtanh.pop %v847
    %v849 = vsub.f32 1.0, %v837
    %851 = vrot.lane.b32.xlu0 %v848, 96
    %v852 = vpop.permute.xlu0 %851
    %v854 = vmul.f32 %v849, %v852
    %v855 = vmul.f32 %v837, %v739
    %v856 = vadd.f32 %v854, %v855
    %858 = vrot.lane.b32.xlu0 %v856, 96
    %v859 = vpop.permute.xlu0 %858
    %s861 = scalar_lea.vmem [#allocation4], 10
    %862 = vst.msk [vmem:[%s861] sm:$0x3] %vm276, %v859
    %s863 = scalar_lea.vmem [#allocation3], 12
    %v864 = vld [vmem:[%s863] sm:$0x3]
    %v865 = vld [vmem:[%s2] sm:$0xff]
    %v866 = vld [vmem:[%s2 + $0x8] sm:$0xff]
    %v867 = vld [vmem:[%s2 + $0x10] sm:$0xff]
    %v868 = vld [vmem:[%s2 + $0x18] sm:$0xff]
    %v869 = vld [vmem:[%s4] sm:$0x1]
    %v871 = vlaneseq
    %v872 = vshrl.u32 %v871, 7
    %v873 = vsub.s32 0, %v872
    %v874 = vrot.slane %v869, %v873
    %v876 = vsel %vm169, %v859, 0
    %878 = vmatprep.subr.mxu0 0.0
    %879 = vmatpush1.msra.mxu0 %v865
    %880 = vmatprep.subr.mxu0 0.0
    %881 = vmatpush1.msra.mxu0 %v866
    %882 = vmatprep.subr.mxu0 0.0
    %883 = vmatpush1.msra.mxu0 %v867
    %884 = vmatprep.subr.mxu0 0.0
    %885 = vmatpush1.msra.mxu0 %v868
    %886 = vmatprep.subr.mxu0 0.0
    %887 = vmatpush1.msra.mxu0 0.0
    %888 = vmatprep.subr.mxu0 0.0
    %889 = vmatpush1.msra.mxu0 0.0
    %890 = vmatprep.subr.mxu0 0.0
    %891 = vmatpush1.msra.mxu0 0.0
    %892 = vmatprep.subr.mxu0 0.0
    %893 = vmatpush1.msra.mxu0 0.0
    %894 = vmatprep.subr.mxu0 0.0
    %895 = vmatpush1.msra.mxu0 0.0
    %896 = vmatprep.subr.mxu0 0.0
    %897 = vmatpush1.msra.mxu0 0.0
    %898 = vmatprep.subr.mxu0 0.0
    %899 = vmatpush1.msra.mxu0 0.0
    %900 = vmatprep.subr.mxu0 0.0
    %901 = vmatpush1.msra.mxu0 0.0
    %902 = vmatprep.subr.mxu0 0.0
    %903 = vmatpush1.msra.mxu0 0.0
    %904 = vmatprep.subr.mxu0 0.0
    %905 = vmatpush1.msra.mxu0 0.0
    %906 = vmatprep.subr.mxu0 0.0
    %907 = vmatpush1.msra.mxu0 0.0
    %908 = vmatprep.subr.mxu0 0.0
    %909 = vmatpush1.msra.mxu0 0.0
    %910 = vmatprep.subr.mxu0 0.0
    %911 = vmatpush1.msra.mxu0 0.0
    %912 = vmatprep.subr.mxu0 0.0
    %913 = vmatpush1.msra.mxu0 0.0
    %914 = vmatprep.subr.mxu0 0.0
    %915 = vmatpush1.msra.mxu0 0.0
    %916 = vmatprep.subr.mxu0 0.0
    %917 = vmatpush1.msra.mxu0 0.0
    %918 = vmatprep.subr.mxu0 0.0
    %919 = vmatpush1.msra.mxu0 0.0
    %920 = vmatprep.subr.mxu0 0.0
    %921 = vmatpush1.msra.mxu0 0.0
    %922 = vmatprep.subr.mxu0 0.0
    %923 = vmatpush1.msra.mxu0 0.0
    %924 = vmatprep.subr.mxu0 0.0
    %925 = vmatpush1.msra.mxu0 0.0
    %926 = vmatprep.subr.mxu0 0.0
    %927 = vmatpush1.msra.mxu0 0.0
    %928 = vmatprep.subr.mxu0 0.0
    %929 = vmatpush1.msra.mxu0 0.0
    %930 = vmatprep.subr.mxu0 0.0
    %931 = vmatpush1.msra.mxu0 0.0
    %932 = vmatprep.subr.mxu0 0.0
    %933 = vmatpush1.msra.mxu0 0.0
    %934 = vmatprep.subr.mxu0 0.0
    %935 = vmatpush1.msra.mxu0 0.0
    %936 = vmatprep.subr.mxu0 0.0
    %937 = vmatpush1.msra.mxu0 0.0
    %938 = vmatprep.subr.mxu0 0.0
    %939 = vmatpush1.msra.mxu0 0.0
    %940 = vmatprep.subr.mxu0 0.0
    %941 = vmatpush1.msra.mxu0 0.0
    %942 = vmatprep.mubr.f32.mxu0 0.0
    %943 = vmatmul.mubr.f32.gmra.mrb[0].mxu0 %v876
    %v944 = vpop.f32.mrb[0].mxu0
    %v945 = vadd.f32 %v874, %v944
    %v946 = vpop.f32.mrb[0].mxu0
    %947 = vdwg.mxu0
    %v948 = vadd.f32 %v864, %v945
    %v949 = vxor.u32 %v948, 2147483648
    %v950 = vmul.f32 %v949, 1.442695
    %v951 = vpow.pop %v950
    %v952 = vadd.f32 %v951, 1.0
    %v953 = vrcp.pop %v952
    %v954 = vmul.f32 1.0, %v953
    %956 = vrot.lane.b32.xlu0 %v945, 64
    %v957 = vpop.permute.xlu0 %956
    %v959 = vmul.f32 %v954, %v957
    %961 = vrot.lane.b32.xlu0 %v959, 64
    %v962 = vpop.permute.xlu0 %961
    %v964 = vadd.f32 %v864, %v962
    %v965 = vtanh.pop %v964
    %v966 = vsub.f32 1.0, %v954
    %968 = vrot.lane.b32.xlu0 %v965, 96
    %v969 = vpop.permute.xlu0 %968
    %v971 = vmul.f32 %v966, %v969
    %v972 = vmul.f32 %v954, %v856
    %v973 = vadd.f32 %v971, %v972
    %975 = vrot.lane.b32.xlu0 %v973, 96
    %v976 = vpop.permute.xlu0 %975
    %s978 = scalar_lea.vmem [#allocation4], 12
    %979 = vst.msk [vmem:[%s978] sm:$0x3] %vm276, %v976
    %s980 = scalar_lea.vmem [#allocation3], 14
    %v981 = vld [vmem:[%s980] sm:$0x3]
    %v982 = vld [vmem:[%s2] sm:$0xff]
    %v983 = vld [vmem:[%s2 + $0x8] sm:$0xff]
    %v984 = vld [vmem:[%s2 + $0x10] sm:$0xff]
    %v985 = vld [vmem:[%s2 + $0x18] sm:$0xff]
    %v986 = vld [vmem:[%s4] sm:$0x1]
    %v988 = vlaneseq
    %v989 = vshrl.u32 %v988, 7
    %v990 = vsub.s32 0, %v989
    %v991 = vrot.slane %v986, %v990
    %v993 = vsel %vm169, %v976, 0
    %995 = vmatprep.subr.mxu0 0.0
    %996 = vmatpush1.msra.mxu0 %v982
    %997 = vmatprep.subr.mxu0 0.0
    %998 = vmatpush1.msra.mxu0 %v983
    %999 = vmatprep.subr.mxu0 0.0
    %1000 = vmatpush1.msra.mxu0 %v984
    %1001 = vmatprep.subr.mxu0 0.0
    %1002 = vmatpush1.msra.mxu0 %v985
    %1003 = vmatprep.subr.mxu0 0.0
    %1004 = vmatpush1.msra.mxu0 0.0
    %1005 = vmatprep.subr.mxu0 0.0
    %1006 = vmatpush1.msra.mxu0 0.0
    %1007 = vmatprep.subr.mxu0 0.0
    %1008 = vmatpush1.msra.mxu0 0.0
    %1009 = vmatprep.subr.mxu0 0.0
    %1010 = vmatpush1.msra.mxu0 0.0
    %1011 = vmatprep.subr.mxu0 0.0
    %1012 = vmatpush1.msra.mxu0 0.0
    %1013 = vmatprep.subr.mxu0 0.0
    %1014 = vmatpush1.msra.mxu0 0.0
    %1015 = vmatprep.subr.mxu0 0.0
    %1016 = vmatpush1.msra.mxu0 0.0
    %1017 = vmatprep.subr.mxu0 0.0
    %1018 = vmatpush1.msra.mxu0 0.0
    %1019 = vmatprep.subr.mxu0 0.0
    %1020 = vmatpush1.msra.mxu0 0.0
    %1021 = vmatprep.subr.mxu0 0.0
    %1022 = vmatpush1.msra.mxu0 0.0
    %1023 = vmatprep.subr.mxu0 0.0
    %1024 = vmatpush1.msra.mxu0 0.0
    %1025 = vmatprep.subr.mxu0 0.0
    %1026 = vmatpush1.msra.mxu0 0.0
    %1027 = vmatprep.subr.mxu0 0.0
    %1028 = vmatpush1.msra.mxu0 0.0
    %1029 = vmatprep.subr.mxu0 0.0
    %1030 = vmatpush1.msra.mxu0 0.0
    %1031 = vmatprep.subr.mxu0 0.0
    %1032 = vmatpush1.msra.mxu0 0.0
    %1033 = vmatprep.subr.mxu0 0.0
    %1034 = vmatpush1.msra.mxu0 0.0
    %1035 = vmatprep.subr.mxu0 0.0
    %1036 = vmatpush1.msra.mxu0 0.0
    %1037 = vmatprep.subr.mxu0 0.0
    %1038 = vmatpush1.msra.mxu0 0.0
    %1039 = vmatprep.subr.mxu0 0.0
    %1040 = vmatpush1.msra.mxu0 0.0
    %1041 = vmatprep.subr.mxu0 0.0
    %1042 = vmatpush1.msra.mxu0 0.0
    %1043 = vmatprep.subr.mxu0 0.0
    %1044 = vmatpush1.msra.mxu0 0.0
    %1045 = vmatprep.subr.mxu0 0.0
    %1046 = vmatpush1.msra.mxu0 0.0
    %1047 = vmatprep.subr.mxu0 0.0
    %1048 = vmatpush1.msra.mxu0 0.0
    %1049 = vmatprep.subr.mxu0 0.0
    %1050 = vmatpush1.msra.mxu0 0.0
    %1051 = vmatprep.subr.mxu0 0.0
    %1052 = vmatpush1.msra.mxu0 0.0
    %1053 = vmatprep.subr.mxu0 0.0
    %1054 = vmatpush1.msra.mxu0 0.0
    %1055 = vmatprep.subr.mxu0 0.0
    %1056 = vmatpush1.msra.mxu0 0.0
    %1057 = vmatprep.subr.mxu0 0.0
    %1058 = vmatpush1.msra.mxu0 0.0
    %1059 = vmatprep.mubr.f32.mxu0 0.0
    %1060 = vmatmul.mubr.f32.gmra.mrb[0].mxu0 %v993
    %v1061 = vpop.f32.mrb[0].mxu0
    %v1062 = vadd.f32 %v991, %v1061
    %v1063 = vpop.f32.mrb[0].mxu0
    %1064 = vdwg.mxu0
    %v1065 = vadd.f32 %v981, %v1062
    %v1066 = vxor.u32 %v1065, 2147483648
    %v1067 = vmul.f32 %v1066, 1.442695
    %v1068 = vpow.pop %v1067
    %v1069 = vadd.f32 %v1068, 1.0
    %v1070 = vrcp.pop %v1069
    %v1071 = vmul.f32 1.0, %v1070
    %1073 = vrot.lane.b32.xlu0 %v1062, 64
    %v1074 = vpop.permute.xlu0 %1073
    %v1076 = vmul.f32 %v1071, %v1074
    %1078 = vrot.lane.b32.xlu0 %v1076, 64
    %v1079 = vpop.permute.xlu0 %1078
    %v1081 = vadd.f32 %v981, %v1079
    %v1082 = vtanh.pop %v1081
    %v1083 = vsub.f32 1.0, %v1071
    %1085 = vrot.lane.b32.xlu0 %v1082, 96
    %v1086 = vpop.permute.xlu0 %1085
    %v1088 = vmul.f32 %v1083, %v1086
    %v1089 = vmul.f32 %v1071, %v973
    %v1090 = vadd.f32 %v1088, %v1089
    %1092 = vrot.lane.b32.xlu0 %v1090, 96
    %v1093 = vpop.permute.xlu0 %1092
    %s1095 = scalar_lea.vmem [#allocation4], 14
    %1096 = vst.msk [vmem:[%s1095] sm:$0x3] %vm276, %v1093
    %1097 = vst.msk [vmem:[#allocation2] sm:$0x3] %vm276, %v1093
    %v1098 = vld [vmem:[#allocation4] sm:$0xff]
    %v1099 = vld [vmem:[#allocation4 + $0x8] sm:$0xff]
    %v1100 = vld [vmem:[%s5] sm:$0xff]
    %v1101 = vld [vmem:[%s5 + $0x8] sm:$0xff]
    %v1102 = vld [vmem:[%s5 + $0x10] sm:$0xff]
    %v1103 = vld [vmem:[%s5 + $0x18] sm:$0xff]
    %v1104 = vld [vmem:[%s6] sm:$0x1]
    %v1106 = vlaneseq
    %v1107 = vshrl.u32 %v1106, 7
    %v1108 = vsub.s32 0, %v1107
    %v1109 = vrot.slane %v1104, %v1108
    %v1112 = vsel %vm169, %v1098, 0
    %v1115 = vsel %vm169, %v1099, 0
    %1117 = vmatprep.subr.mxu0 0.0
    %1118 = vmatpush1.msra.mxu0 %v1100
    %1119 = vmatprep.subr.mxu0 0.0
    %1120 = vmatpush1.msra.mxu0 %v1101
    %1121 = vmatprep.subr.mxu0 0.0
    %1122 = vmatpush1.msra.mxu0 %v1102
    %1123 = vmatprep.subr.mxu0 0.0
    %1124 = vmatpush1.msra.mxu0 %v1103
    %1125 = vmatprep.subr.mxu0 0.0
    %1126 = vmatpush1.msra.mxu0 0.0
    %1127 = vmatprep.subr.mxu0 0.0
    %1128 = vmatpush1.msra.mxu0 0.0
    %1129 = vmatprep.subr.mxu0 0.0
    %1130 = vmatpush1.msra.mxu0 0.0
    %1131 = vmatprep.subr.mxu0 0.0
    %1132 = vmatpush1.msra.mxu0 0.0
    %1133 = vmatprep.subr.mxu0 0.0
    %1134 = vmatpush1.msra.mxu0 0.0
    %1135 = vmatprep.subr.mxu0 0.0
    %1136 = vmatpush1.msra.mxu0 0.0
    %1137 = vmatprep.subr.mxu0 0.0
    %1138 = vmatpush1.msra.mxu0 0.0
    %1139 = vmatprep.subr.mxu0 0.0
    %1140 = vmatpush1.msra.mxu0 0.0
    %1141 = vmatprep.subr.mxu0 0.0
    %1142 = vmatpush1.msra.mxu0 0.0
    %1143 = vmatprep.subr.mxu0 0.0
    %1144 = vmatpush1.msra.mxu0 0.0
    %1145 = vmatprep.subr.mxu0 0.0
    %1146 = vmatpush1.msra.mxu0 0.0
    %1147 = vmatprep.subr.mxu0 0.0
    %1148 = vmatpush1.msra.mxu0 0.0
    %1149 = vmatprep.subr.mxu0 0.0
    %1150 = vmatpush1.msra.mxu0 0.0
    %1151 = vmatprep.subr.mxu0 0.0
    %1152 = vmatpush1.msra.mxu0 0.0
    %1153 = vmatprep.subr.mxu0 0.0
    %1154 = vmatpush1.msra.mxu0 0.0
    %1155 = vmatprep.subr.mxu0 0.0
    %1156 = vmatpush1.msra.mxu0 0.0
    %1157 = vmatprep.subr.mxu0 0.0
    %1158 = vmatpush1.msra.mxu0 0.0
    %1159 = vmatprep.subr.mxu0 0.0
    %1160 = vmatpush1.msra.mxu0 0.0
    %1161 = vmatprep.subr.mxu0 0.0
    %1162 = vmatpush1.msra.mxu0 0.0
    %1163 = vmatprep.subr.mxu0 0.0
    %1164 = vmatpush1.msra.mxu0 0.0
    %1165 = vmatprep.subr.mxu0 0.0
    %1166 = vmatpush1.msra.mxu0 0.0
    %1167 = vmatprep.subr.mxu0 0.0
    %1168 = vmatpush1.msra.mxu0 0.0
    %1169 = vmatprep.subr.mxu0 0.0
    %1170 = vmatpush1.msra.mxu0 0.0
    %1171 = vmatprep.subr.mxu0 0.0
    %1172 = vmatpush1.msra.mxu0 0.0
    %1173 = vmatprep.subr.mxu0 0.0
    %1174 = vmatpush1.msra.mxu0 0.0
    %1175 = vmatprep.subr.mxu0 0.0
    %1176 = vmatpush1.msra.mxu0 0.0
    %1177 = vmatprep.subr.mxu0 0.0
    %1178 = vmatpush1.msra.mxu0 0.0
    %1179 = vmatprep.subr.mxu0 0.0
    %1180 = vmatpush1.msra.mxu0 0.0
    %1181 = vmatprep.mubr.f32.mxu0 0.0
    %1182 = vmatmul.mubr.f32.gmra.mrb[0].mxu0 %v1112
    %v1183 = vpop.f32.mrb[0].mxu0
    %v1184 = vadd.f32 %v1109, %v1183
    %v1185 = vpop.f32.mrb[0].mxu0
    %1186 = vmatprep.mubr.f32.mxu0 0.0
    %1187 = vmatmul.mubr.f32.gmra.mrb[0].mxu0 %v1115
    %v1188 = vpop.f32.mrb[0].mxu0
    %v1189 = vadd.f32 %v1109, %v1188
    %v1190 = vpop.f32.mrb[0].mxu0
    %1191 = vdwg.mxu0
    %vm1192 = vcmask 23552
    %v1193 = vsel %vm1192, %v1184, -inf
    %1194 = vmax.xlane.f32.xlu0 %v1193
    %v1195 = vpop.xlane.xlu0 %1194
    %v1196 = vsel %vm1192, %v1189, -inf
    %1197 = vmax.xlane.f32.xlu0 %v1196
    %v1198 = vpop.xlane.xlu0 %1197
    %v1199 = vsub.f32 %v1184, %v1195
    %v1200 = vsub.f32 %v1189, %v1198
    %v1201 = vmul.f32 %v1199, 1.442695
    %v1202 = vpow.pop %v1201
    %v1203 = vmul.f32 %v1200, 1.442695
    %v1204 = vpow.pop %v1203
    %v1205 = vsel %vm1192, %v1202, 0.0
    %1206 = vadd.xlane.f32.xlu0 %v1205
    %v1207 = vpop.xlane.xlu0 %1206
    %v1208 = vsel %vm1192, %v1204, 0.0
    %1209 = vadd.xlane.f32.xlu0 %v1208
    %v1210 = vpop.xlane.xlu0 %1209
    %v1211 = vrcp.pop %v1207
    %v1212 = vrcp.pop %v1210
    %v1213 = vmul.f32 %v1202, %v1211
    %v1214 = vmul.f32 %v1204, %v1212
    %1215 = vst.msk [vmem:[%s7] sm:$0xff] %vm1192, %v1213
    %1216 = vst.msk [vmem:[%s7 + $0x8] sm:$0xff] %vm1192, %v1214
    %vm1217 = vcmask 64536
    %v1218 = vsel %vm1217, %v1184, -inf
    %1219 = vmax.xlane.f32.xlu0 %v1218
    %v1220 = vpop.xlane.xlu0 %1219
    %v1221 = vsel %vm1217, %v1189, -inf
    %1222 = vmax.xlane.f32.xlu0 %v1221
    %v1223 = vpop.xlane.xlu0 %1222
    %v1224 = vsub.f32 %v1184, %v1220
    %v1225 = vsub.f32 %v1189, %v1223
    %v1226 = vmul.f32 %v1224, 1.442695
    %v1227 = vpow.pop %v1226
    %v1228 = vmul.f32 %v1225, 1.442695
    %v1229 = vpow.pop %v1228
    %1232 = vrot.lane.b32.xlu0 %v1227, 125
    %v1233 = vpop.permute.xlu0 %1232
    %1234 = vrot.lane.b32.xlu0 %v1229, 125
    %v1235 = vpop.permute.xlu0 %1234
    %vm1238 = vcmask 39936
    %v1239 = vsel %vm1238, %v1233, 0.0
    %1240 = vadd.xlane.f32.xlu0 %v1239
    %v1241 = vpop.xlane.xlu0 %1240
    %v1242 = vsel %vm1238, %v1235, 0.0
    %1243 = vadd.xlane.f32.xlu0 %v1242
    %v1244 = vpop.xlane.xlu0 %1243
    %v1245 = vrcp.pop %v1241
    %v1246 = vrcp.pop %v1244
    %v1247 = vmul.f32 %v1227, %v1245
    %v1248 = vmul.f32 %v1229, %v1246
    %1249 = vst.msk [vmem:[%s7] sm:$0xff] %vm1217, %v1247
    %1250 = vst.msk [vmem:[%s7 + $0x8] sm:$0xff] %vm1217, %v1248
    // Predicated region
    $region42: #{tpu_custom_call.1} parent=1 // pred_check
      _
    $region43: #{tpu_custom_call.1} parent=1 // pred_check_branch
      %1252 = sbr.rel (0) target = $region45
    $region44: #{tpu_custom_call.1} parent=1 // pred_region
      _
    $region45: #{tpu_custom_call.1} parent=1 // pred_fallthru
      _
    // Predicated region
    $region46: #{tpu_custom_call.1} parent=1 // pred_check
      _
    $region47: #{tpu_custom_call.1} parent=1 // pred_check_branch
      %1254 = sbr.rel (0) target = $region49
    $region48: #{tpu_custom_call.1} parent=1 // pred_region
      _
    $region49: #{tpu_custom_call.1} parent=1 // pred_fallthru
      _
    %1255 = vsyncpa [#allocation6], 1
    %1256 = vsyncpa [#allocation8], 1

</llo_original>
